<compile_context>
chip_gen: v5e
topology: v5e:2x2
jax: 0.10.0
libtpu: 0.0.40
codegen_flags: <defaults>
</compile_context>

<pallas_src>
import math
import functools

import jax
import jax.numpy as jnp
from jax.experimental import pallas as pl
from jax.experimental.pallas import tpu as pltpu


def _round_up(x, m):
    return ((x + m - 1) // m) * m


# ----------------------------- in-kernel helpers ------------------------------

def _layernorm_padded(x, gamma, beta, d_real, eps=1e-5):
    """LayerNorm over a lane-padded last dim.

    Padded columns of `x` are exactly zero and gamma/beta are zero there, so
    sums over the padded width equal sums over the real width; statistics are
    divided by the real feature count `d_real`.  Padded output columns stay 0.
    """
    s1 = jnp.sum(x, axis=-1, keepdims=True)
    s2 = jnp.sum(x * x, axis=-1, keepdims=True)
    mean = s1 / d_real
    var = s2 / d_real - mean * mean
    return (x - mean) * jax.lax.rsqrt(var + eps) * gamma + beta


# ------------------------------- fused kernel ---------------------------------

def encoder_fused_kernel(x_ref, wqkv_ref, wo_ref, w1_ref, b1_ref, w2_ref,
                         vec_ref, nrm_ref, o_ref, act_ref, *, d_real, scale):
    """One grid step = one EncoderLayer applied to one batch tile.

    Grid = (batch_tiles, n_layers); layer axis innermost ("arbitrary").
    The activation carries across layers in VMEM scratch `act_ref`; the final
    Encoder LayerNorm is fused into the last layer step.
    """
    layer = pl.program_id(1)
    n_layers = pl.num_programs(1)
    Bt, L, Dp = act_ref.shape

    @pl.when(layer == 0)
    def _():
        act_ref[...] = x_ref[...].astype(jnp.float32)

    x = act_ref[...]                                   # (Bt, L, Dp) f32, pad cols == 0
    x2d = x.reshape(Bt * L, Dp)
    xb = x2d.astype(jnp.bfloat16)

    # packed per-layer vectors: [b2, g1, be1, g2, be2]  (5, Dp) f32
    vec = vec_ref[0]
    b2 = vec[0:1]
    g1 = vec[1:2]
    be1 = vec[2:3]
    g2 = vec[3:4]
    be2 = vec[4:5]

    # ---- fused QKV projection (single MXU matmul), scale folded into q ----
    qkv = jnp.dot(xb, wqkv_ref[0], preferred_element_type=jnp.float32)  # (Bt*L, 3Dp)
    q3 = (qkv[:, :Dp] * scale).reshape(Bt, L, Dp).astype(jnp.bfloat16)
    k3 = qkv[:, Dp:2 * Dp].reshape(Bt, L, Dp).astype(jnp.bfloat16)
    v3 = qkv[:, 2 * Dp:].reshape(Bt, L, Dp).astype(jnp.bfloat16)

    # ---- single-head self attention ----
    s = jnp.einsum('bqd,bkd->bqk', q3, k3,
                   preferred_element_type=jnp.float32)                  # (Bt, L, L)
    s = s - jnp.max(s, axis=-1, keepdims=True)
    p = jnp.exp(s)
    inv = pl.reciprocal(jnp.sum(p, axis=-1, keepdims=True), approx=True)
    ctx = jnp.einsum('bqk,bkd->bqd', p.astype(jnp.bfloat16), v3,
                     preferred_element_type=jnp.float32) * inv          # (Bt, L, Dp)
    attn = jnp.dot(ctx.reshape(Bt * L, Dp).astype(jnp.bfloat16), wo_ref[0],
                   preferred_element_type=jnp.float32)                  # (Bt*L, Dp)

    # ---- residual + norm1 ----
    x1 = _layernorm_padded(x2d + attn, g1, be1, d_real)

    # ---- FFN (Conv1d kernel_size=1 == channel matmul) ----
    h = jnp.maximum(
        jnp.dot(x1.astype(jnp.bfloat16), w1_ref[0],
                preferred_element_type=jnp.float32) + b1_ref[0], 0.0)   # (Bt*L, Fp)
    y = jnp.dot(h.astype(jnp.bfloat16), w2_ref[0],
                preferred_element_type=jnp.float32) + b2                # (Bt*L, Dp)

    # ---- residual + norm2 ----
    x2 = _layernorm_padded(x1 + y, g2, be2, d_real)
    act_ref[...] = x2.reshape(Bt, L, Dp)

    # ---- fused final Encoder norm on the last layer step ----
    @pl.when(layer == n_layers - 1)
    def _():
        nrm = nrm_ref[0]                               # (2, Dp): [gamma, beta]
        out = _layernorm_padded(x2, nrm[0:1], nrm[1:2], d_real)
        o_ref[...] = out.reshape(Bt, L, Dp).astype(o_ref.dtype)


# ------------------------------- JAX wrapper -----------------------------------

def encoder_forward(x, layer_params, norm_params, *, batch_tile=None):
    """Mirrors Encoder.forward with conv_layers=None and norm_layer=LayerNorm.

    Returns (output, None) like the PyTorch module.
    """
    B, L, D = x.shape
    d_ff = layer_params[0]["w1"].shape[1]
    n_layers = len(layer_params)
    Dp = _round_up(D, 128)
    Fp = _round_up(d_ff, 128)
    Bt = B if batch_tile is None else batch_tile
    assert B % Bt == 0

    def pad2(w, rp, cp):
        r, c = w.shape
        return jnp.pad(w, ((0, rp - r), (0, cp - c)))

    # --- pad & stack parameters (lane-dense; matmul weights in bf16) ---
    wqkv = jnp.stack([
        jnp.concatenate([pad2(p["wq"], Dp, Dp),
                         pad2(p["wk"], Dp, Dp),
                         pad2(p["wv"], Dp, Dp)], axis=1)
        for p in layer_params]).astype(jnp.bfloat16)               # (nl, Dp, 3Dp)
    wo = jnp.stack([pad2(p["wo"], Dp, Dp)
                    for p in layer_params]).astype(jnp.bfloat16)   # (nl, Dp, Dp)
    w1 = jnp.stack([pad2(p["w1"], Dp, Fp)
                    for p in layer_params]).astype(jnp.bfloat16)   # (nl, Dp, Fp)
    w2 = jnp.stack([pad2(p["w2"], Fp, Dp)
                    for p in layer_params]).astype(jnp.bfloat16)   # (nl, Fp, Dp)
    b1 = jnp.stack([pad2(p["b1"], 1, Fp) for p in layer_params])   # (nl, 1, Fp) f32
    vec = jnp.stack([
        jnp.concatenate([pad2(p["b2"], 1, Dp), pad2(p["g1"], 1, Dp),
                         pad2(p["be1"], 1, Dp), pad2(p["g2"], 1, Dp),
                         pad2(p["be2"], 1, Dp)], axis=0)
        for p in layer_params])                                    # (nl, 5, Dp) f32
    nrm = jnp.concatenate([pad2(norm_params["g"], 1, Dp),
                           pad2(norm_params["b"], 1, Dp)], axis=0)[None]  # (1,2,Dp)

    xp = jnp.pad(x, ((0, 0), (0, 0), (0, Dp - D)))

    kernel = functools.partial(encoder_fused_kernel,
                               d_real=float(D), scale=1.0 / math.sqrt(D))

    out_p = pl.pallas_call(
        kernel,
        out_shape=jax.ShapeDtypeStruct((B, L, Dp), x.dtype),
        grid=(B // Bt, n_layers),                       # layer axis innermost (carry)
        in_specs=[
            pl.BlockSpec((Bt, L, Dp), lambda bi, l: (bi, 0, 0)),          # x
            pl.BlockSpec((1, Dp, 3 * Dp), lambda bi, l: (l, 0, 0)),       # wqkv
            pl.BlockSpec((1, Dp, Dp), lambda bi, l: (l, 0, 0)),           # wo
            pl.BlockSpec((1, Dp, Fp), lambda bi, l: (l, 0, 0)),           # w1
            pl.BlockSpec((1, 1, Fp), lambda bi, l: (l, 0, 0)),            # b1
            pl.BlockSpec((1, Fp, Dp), lambda bi, l: (l, 0, 0)),           # w2
            pl.BlockSpec((1, 5, Dp), lambda bi, l: (l, 0, 0)),            # packed vecs
            pl.BlockSpec((1, 2, Dp), lambda bi, l: (0, 0, 0)),            # final norm
        ],
        out_specs=pl.BlockSpec((Bt, L, Dp), lambda bi, l: (bi, 0, 0)),
        scratch_shapes=[pltpu.VMEM((Bt, L, Dp), jnp.float32)],            # act carry
        compiler_params=pltpu.CompilerParams(
            dimension_semantics=("parallel", "arbitrary")),
    )(xp, wqkv, wo, w1, b1, w2, vec, nrm)

    return out_p[:, :, :D], None


# --------------------------- pure-JAX reference --------------------------------

def _ref_ln(x, g, b, eps=1e-5):
    mu = jnp.mean(x, axis=-1, keepdims=True)
    var = jnp.mean((x - mu) ** 2, axis=-1, keepdims=True)
    return (x - mu) / jnp.sqrt(var + eps) * g + b


def encoder_forward_ref(x, layer_params, norm_params):
    D = x.shape[-1]
    for p in layer_params:
        q = x @ p["wq"]; k = x @ p["wk"]; v = x @ p["wv"]
        s = jnp.einsum('bqd,bkd->bqk', q, k) / math.sqrt(D)
        a = jax.nn.softmax(s, axis=-1)
        attn = jnp.einsum('bqk,bkd->bqd', a, v) @ p["wo"]
        x1 = _ref_ln(x + attn, p["g1"], p["be1"])
        h = jax.nn.relu(x1 @ p["w1"] + p["b1"])
        y = h @ p["w2"] + p["b2"]
        x = _ref_ln(x1 + y, p["g2"], p["be2"])
    return _ref_ln(x, norm_params["g"], norm_params["b"])


# --------------------------- deterministic param init --------------------------

def make_params(key, n_layers, D, d_ff):
    layer_params = []
    for _ in range(n_layers):
        ks = jax.random.split(key, 7)
        key = ks[0]
        p = {
            "wq": 0.05 * jax.random.normal(ks[1], (D, D), jnp.float32),
            "wk": 0.05 * jax.random.normal(ks[2], (D, D), jnp.float32),
            "wv": 0.05 * jax.random.normal(ks[3], (D, D), jnp.float32),
            "wo": 0.05 * jax.random.normal(ks[4], (D, D), jnp.float32),
            "w1": 0.05 * jax.random.normal(ks[5], (D, d_ff), jnp.float32),
            "b1": jnp.zeros((1, d_ff), jnp.float32),
            "w2": 0.05 * jax.random.normal(ks[6], (d_ff, D), jnp.float32),
            "b2": jnp.zeros((1, D), jnp.float32),
            "g1": jnp.ones((1, D), jnp.float32),
            "be1": jnp.zeros((1, D), jnp.float32),
            "g2": jnp.ones((1, D), jnp.float32),
            "be2": jnp.zeros((1, D), jnp.float32),
        }
        layer_params.append(p)
    norm_params = {"g": jnp.ones((1, D), jnp.float32),
                   "b": jnp.zeros((1, D), jnp.float32)}
    return layer_params, norm_params


# ------------------------------------ main --------------------------------------

if __name__ == "__main__":
    B, L, D, d_ff, n_layers = 2, 16, 32, 64, 2

    key = jax.random.PRNGKey(0)
    kx, kp = jax.random.split(key)
    x = jax.random.normal(kx, (B, L, D), jnp.float32)
    layer_params, norm_params = make_params(kp, n_layers, D, d_ff)

    # TODO(synk): the conv_layers (downsampling ConvLayer) branch of Encoder is
    # not instantiated here; this mirrors the conv_layers=None code path.
    out, attns = encoder_forward(x, layer_params, norm_params)
    out = jax.block_until_ready(out)

    assert out.shape == (B, L, D) and attns is None
    assert bool(jnp.all(jnp.isfinite(out)))

    # Numerical check vs. pure-JAX f32 reference (kernel uses bf16 matmuls +
    # approx reciprocal, so tolerance is loose).
    ref = encoder_forward_ref(x, layer_params, norm_params)
    max_diff = float(jnp.max(jnp.abs(out - ref)))
    assert max_diff < 0.1, f"max diff {max_diff}"

    print("KERNEL_OK")
</pallas_src>

<mosaic_0001>
module attributes {stable_mosaic.version = 11 : i64} {
  func.func @encoder_fused_kernel(%arg0: i32, %arg1: i32, %arg2: memref<2x16x128xf32, #tpu.memory_space<vmem>>, %arg3: memref<1x128x384xbf16, #tpu.memory_space<vmem>>, %arg4: memref<1x128x128xbf16, #tpu.memory_space<vmem>>, %arg5: memref<1x128x128xbf16, #tpu.memory_space<vmem>>, %arg6: memref<1x1x128xf32, #tpu.memory_space<vmem>>, %arg7: memref<1x128x128xbf16, #tpu.memory_space<vmem>>, %arg8: memref<1x5x128xf32, #tpu.memory_space<vmem>>, %arg9: memref<1x2x128xf32, #tpu.memory_space<vmem>>, %arg10: memref<2x16x128xf32, #tpu.memory_space<vmem>>, %arg11: memref<2x16x128xf32, #tpu.memory_space<vmem>>) attributes {dimension_semantics = [#tpu.dimension_semantics<parallel>, #tpu.dimension_semantics<arbitrary>], iteration_bounds = array<i64: 1, 2>, scalar_prefetch = 0 : i64, scratch_operands = 1 : i64, tpu.core_type = #tpu.core_type<tc>, window_params = [{transform_indices = @transform_0, window_bounds = array<i64: 2, 16, 128>}, {transform_indices = @transform_1, window_bounds = array<i64: 1, 128, 384>}, {transform_indices = @transform_2, window_bounds = array<i64: 1, 128, 128>}, {transform_indices = @transform_3, window_bounds = array<i64: 1, 128, 128>}, {transform_indices = @transform_4, window_bounds = array<i64: 1, 1, 128>}, {transform_indices = @transform_5, window_bounds = array<i64: 1, 128, 128>}, {transform_indices = @transform_6, window_bounds = array<i64: 1, 5, 128>}, {pipeline_mode = #tpu.pipeline_mode<synchronous>, transform_indices = @transform_7, window_bounds = array<i64: 1, 2, 128>}, {transform_indices = @transform_8, window_bounds = array<i64: 2, 16, 128>}]} {
    %c0_i32 = arith.constant 0 : i32
    %0 = arith.cmpi eq, %arg1, %c0_i32 : i32
    %1 = arith.extui %0 : i1 to i32
    %c0_i32_0 = arith.constant 0 : i32
    %2 = arith.cmpi ne, %1, %c0_i32_0 : i32
    scf.if %2 {
      %c0_44 = arith.constant 0 : index
      %c0_45 = arith.constant 0 : index
      %c0_46 = arith.constant 0 : index
      %112 = vector.load %arg2[%c0_44, %c0_45, %c0_46] : memref<2x16x128xf32, #tpu.memory_space<vmem>>, vector<2x16x128xf32>
      %c0_47 = arith.constant 0 : index
      %c0_48 = arith.constant 0 : index
      %c0_49 = arith.constant 0 : index
      %113 = vector.load %arg11[%c0_47, %c0_48, %c0_49] : memref<2x16x128xf32, #tpu.memory_space<vmem>>, vector<2x16x128xf32>
      tpu.vector_store %arg11[%c0_47, %c0_48, %c0_49], %112 {strides = array<i32>} : memref<2x16x128xf32, #tpu.memory_space<vmem>>, vector<2x16x128xf32>,
    } else {
    }
    %c0 = arith.constant 0 : index
    %c0_1 = arith.constant 0 : index
    %c0_2 = arith.constant 0 : index
    %3 = vector.load %arg11[%c0, %c0_1, %c0_2] : memref<2x16x128xf32, #tpu.memory_space<vmem>>, vector<2x16x128xf32>
    %4 = vector.shape_cast %3 : vector<2x16x128xf32> to vector<32x128xf32>
    %5 = arith.truncf %4 : vector<32x128xf32> to vector<32x128xbf16>
    %c0_3 = arith.constant 0 : index
    %c0_4 = arith.constant 0 : index
    %c0_5 = arith.constant 0 : index
    %6 = vector.load %arg8[%c0_3, %c0_4, %c0_5] : memref<1x5x128xf32, #tpu.memory_space<vmem>>, vector<1x5x128xf32>
    %7 = vector.shape_cast %6 : vector<1x5x128xf32> to vector<5x128xf32>
    %8 = vector.extract_strided_slice %7 {offsets = [0, 0], sizes = [1, 128], strides = [1, 1]} : vector<5x128xf32> to vector<1x128xf32>
    %9 = vector.extract_strided_slice %7 {offsets = [1, 0], sizes = [1, 128], strides = [1, 1]} : vector<5x128xf32> to vector<1x128xf32>
    %10 = vector.extract_strided_slice %7 {offsets = [2, 0], sizes = [1, 128], strides = [1, 1]} : vector<5x128xf32> to vector<1x128xf32>
    %11 = vector.extract_strided_slice %7 {offsets = [3, 0], sizes = [1, 128], strides = [1, 1]} : vector<5x128xf32> to vector<1x128xf32>
    %12 = vector.extract_strided_slice %7 {offsets = [4, 0], sizes = [1, 128], strides = [1, 1]} : vector<5x128xf32> to vector<1x128xf32>
    %c0_6 = arith.constant 0 : index
    %c0_7 = arith.constant 0 : index
    %c0_8 = arith.constant 0 : index
    %13 = vector.load %arg3[%c0_6, %c0_7, %c0_8] : memref<1x128x384xbf16, #tpu.memory_space<vmem>>, vector<1x128x384xbf16>
    %14 = vector.shape_cast %13 : vector<1x128x384xbf16> to vector<128x384xbf16>
    %cst = arith.constant dense<0.000000e+00> : vector<32x384xf32>
    %15 = tpu.matmul %5, %14, %cst {dimension_numbers = #tpu.dot_dimension_numbers<[1], [0], [0], [1], [0, 0, 1, 1], [], []>} : vector<32x128xbf16>, vector<128x384xbf16>, vector<32x384xf32> -> vector<32x384xf32>
    %16 = vector.extract_strided_slice %15 {offsets = [0, 0], sizes = [32, 128], strides = [1, 1]} : vector<32x384xf32> to vector<32x128xf32>
    %cst_9 = arith.constant 0.176776692 : f32
    %17 = vector.broadcast %cst_9 : f32 to vector<32x128xf32>
    %18 = arith.mulf %16, %17 : vector<32x128xf32>
    %19 = vector.shape_cast %18 : vector<32x128xf32> to vector<2x16x128xf32>
    %20 = arith.truncf %19 : vector<2x16x128xf32> to vector<2x16x128xbf16>
    %21 = vector.extract_strided_slice %15 {offsets = [0, 128], sizes = [32, 128], strides = [1, 1]} : vector<32x384xf32> to vector<32x128xf32>
    %22 = vector.shape_cast %21 : vector<32x128xf32> to vector<2x16x128xf32>
    %23 = arith.truncf %22 : vector<2x16x128xf32> to vector<2x16x128xbf16>
    %24 = vector.extract_strided_slice %15 {offsets = [0, 256], sizes = [32, 128], strides = [1, 1]} : vector<32x384xf32> to vector<32x128xf32>
    %25 = vector.shape_cast %24 : vector<32x128xf32> to vector<2x16x128xf32>
    %26 = arith.truncf %25 : vector<2x16x128xf32> to vector<2x16x128xbf16>
    "tpu.trace_start"() <{level = 10 : i32, message = "bqd,bkd->bqk"}> : () -> ()
    %cst_10 = arith.constant dense<0.000000e+00> : vector<2x16x16xf32>
    %27 = tpu.matmul %20, %23, %cst_10 {dimension_numbers = #tpu.dot_dimension_numbers<[2], [2], [1], [1], [0, 0, 0, 1, 1, 1], [0], [0]>} : vector<2x16x128xbf16>, vector<2x16x128xbf16>, vector<2x16x16xf32> -> vector<2x16x16xf32>
    "tpu.trace_stop"() : () -> ()
    %cst_11 = arith.constant dense<0xFF800000> : vector<2x16xf32>
    %28 = vector.multi_reduction <maximumf>, %27, %cst_11 [2] : vector<2x16x16xf32> to vector<2x16xf32>
    %29 = vector.shape_cast %28 : vector<2x16xf32> to vector<2x16x1xf32>
    %30 = vector.broadcast %29 : vector<2x16x1xf32> to vector<2x16x16xf32>
    %31 = arith.subf %27, %30 : vector<2x16x16xf32>
    %32 = math.exp %31 : vector<2x16x16xf32>
    %cst_12 = arith.constant dense<0.000000e+00> : vector<2x16xf32>
    %33 = vector.multi_reduction <add>, %32, %cst_12 [2] : vector<2x16x16xf32> to vector<2x16xf32>
    %34 = vector.shape_cast %33 : vector<2x16xf32> to vector<2x16x1xf32>
    %35 = tpu.reciprocal %34 {approx = true} : vector<2x16x1xf32> -> vector<2x16x1xf32>
    %36 = arith.truncf %32 : vector<2x16x16xf32> to vector<2x16x16xbf16>
    "tpu.trace_start"() <{level = 10 : i32, message = "bqk,bkd->bqd"}> : () -> ()
    %cst_13 = arith.constant dense<0.000000e+00> : vector<2x16x128xf32>
    %37 = tpu.matmul %36, %26, %cst_13 {dimension_numbers = #tpu.dot_dimension_numbers<[2], [1], [1], [2], [0, 0, 0, 1, 1, 2], [0], [0]>} : vector<2x16x16xbf16>, vector<2x16x128xbf16>, vector<2x16x128xf32> -> vector<2x16x128xf32>
    "tpu.trace_stop"() : () -> ()
    %38 = vector.broadcast %35 : vector<2x16x1xf32> to vector<2x16x128xf32>
    %39 = arith.mulf %37, %38 : vector<2x16x128xf32>
    %40 = vector.shape_cast %39 : vector<2x16x128xf32> to vector<32x128xf32>
    %41 = arith.truncf %40 : vector<32x128xf32> to vector<32x128xbf16>
    %c0_14 = arith.constant 0 : index
    %c0_15 = arith.constant 0 : index
    %c0_16 = arith.constant 0 : index
    %42 = vector.load %arg4[%c0_14, %c0_15, %c0_16] : memref<1x128x128xbf16, #tpu.memory_space<vmem>>, vector<1x128x128xbf16>
    %43 = vector.shape_cast %42 : vector<1x128x128xbf16> to vector<128x128xbf16>
    %cst_17 = arith.constant dense<0.000000e+00> : vector<32x128xf32>
    %44 = tpu.matmul %41, %43, %cst_17 {dimension_numbers = #tpu.dot_dimension_numbers<[1], [0], [0], [1], [0, 0, 1, 1], [], []>} : vector<32x128xbf16>, vector<128x128xbf16>, vector<32x128xf32> -> vector<32x128xf32>
    %45 = arith.addf %4, %44 : vector<32x128xf32>
    %cst_18 = arith.constant dense<0.000000e+00> : vector<32xf32>
    %46 = vector.multi_reduction <add>, %45, %cst_18 [1] : vector<32x128xf32> to vector<32xf32>
    %47 = vector.shape_cast %46 : vector<32xf32> to vector<32x1xf32>
    %48 = arith.mulf %45, %45 : vector<32x128xf32>
    %cst_19 = arith.constant dense<0.000000e+00> : vector<32xf32>
    %49 = vector.multi_reduction <add>, %48, %cst_19 [1] : vector<32x128xf32> to vector<32xf32>
    %50 = vector.shape_cast %49 : vector<32xf32> to vector<32x1xf32>
    %cst_20 = arith.constant 3.200000e+01 : f32
    %51 = vector.broadcast %cst_20 : f32 to vector<32x1xf32>
    %52 = arith.divf %47, %51 : vector<32x1xf32>
    %cst_21 = arith.constant 3.200000e+01 : f32
    %53 = vector.broadcast %cst_21 : f32 to vector<32x1xf32>
    %54 = arith.divf %50, %53 : vector<32x1xf32>
    %55 = arith.mulf %52, %52 : vector<32x1xf32>
    %56 = arith.subf %54, %55 : vector<32x1xf32>
    %57 = vector.broadcast %52 : vector<32x1xf32> to vector<32x128xf32>
    %58 = arith.subf %45, %57 : vector<32x128xf32>
    %cst_22 = arith.constant 9.99999974E-6 : f32
    %59 = vector.broadcast %cst_22 : f32 to vector<32x1xf32>
    %60 = arith.addf %56, %59 : vector<32x1xf32>
    %61 = math.rsqrt %60 : vector<32x1xf32>
    %62 = vector.broadcast %61 : vector<32x1xf32> to vector<32x128xf32>
    %63 = arith.mulf %58, %62 : vector<32x128xf32>
    %64 = vector.broadcast %9 : vector<1x128xf32> to vector<32x128xf32>
    %65 = arith.mulf %63, %64 : vector<32x128xf32>
    %66 = vector.broadcast %10 : vector<1x128xf32> to vector<32x128xf32>
    %67 = arith.addf %65, %66 : vector<32x128xf32>
    %68 = arith.truncf %67 : vector<32x128xf32> to vector<32x128xbf16>
    %c0_23 = arith.constant 0 : index
    %c0_24 = arith.constant 0 : index
    %c0_25 = arith.constant 0 : index
    %69 = vector.load %arg5[%c0_23, %c0_24, %c0_25] : memref<1x128x128xbf16, #tpu.memory_space<vmem>>, vector<1x128x128xbf16>
    %70 = vector.shape_cast %69 : vector<1x128x128xbf16> to vector<128x128xbf16>
    %cst_26 = arith.constant dense<0.000000e+00> : vector<32x128xf32>
    %71 = tpu.matmul %68, %70, %cst_26 {dimension_numbers = #tpu.dot_dimension_numbers<[1], [0], [0], [1], [0, 0, 1, 1], [], []>} : vector<32x128xbf16>, vector<128x128xbf16>, vector<32x128xf32> -> vector<32x128xf32>
    %c0_27 = arith.constant 0 : index
    %c0_28 = arith.constant 0 : index
    %c0_29 = arith.constant 0 : index
    %72 = vector.load %arg6[%c0_27, %c0_28, %c0_29] : memref<1x1x128xf32, #tpu.memory_space<vmem>>, vector<1x1x128xf32>
    %73 = vector.shape_cast %72 : vector<1x1x128xf32> to vector<1x128xf32>
    %74 = vector.broadcast %73 : vector<1x128xf32> to vector<32x128xf32>
    %75 = arith.addf %71, %74 : vector<32x128xf32>
    %cst_30 = arith.constant 0.000000e+00 : f32
    %76 = vector.broadcast %cst_30 : f32 to vector<32x128xf32>
    %77 = arith.maximumf %75, %76 : vector<32x128xf32>
    %78 = arith.truncf %77 : vector<32x128xf32> to vector<32x128xbf16>
    %c0_31 = arith.constant 0 : index
    %c0_32 = arith.constant 0 : index
    %c0_33 = arith.constant 0 : index
    %79 = vector.load %arg7[%c0_31, %c0_32, %c0_33] : memref<1x128x128xbf16, #tpu.memory_space<vmem>>, vector<1x128x128xbf16>
    %80 = vector.shape_cast %79 : vector<1x128x128xbf16> to vector<128x128xbf16>
    %cst_34 = arith.constant dense<0.000000e+00> : vector<32x128xf32>
    %81 = tpu.matmul %78, %80, %cst_34 {dimension_numbers = #tpu.dot_dimension_numbers<[1], [0], [0], [1], [0, 0, 1, 1], [], []>} : vector<32x128xbf16>, vector<128x128xbf16>, vector<32x128xf32> -> vector<32x128xf32>
    %82 = vector.broadcast %8 : vector<1x128xf32> to vector<32x128xf32>
    %83 = arith.addf %81, %82 : vector<32x128xf32>
    %84 = arith.addf %67, %83 : vector<32x128xf32>
    %cst_35 = arith.constant dense<0.000000e+00> : vector<32xf32>
    %85 = vector.multi_reduction <add>, %84, %cst_35 [1] : vector<32x128xf32> to vector<32xf32>
    %86 = vector.shape_cast %85 : vector<32xf32> to vector<32x1xf32>
    %87 = arith.mulf %84, %84 : vector<32x128xf32>
    %cst_36 = arith.constant dense<0.000000e+00> : vector<32xf32>
    %88 = vector.multi_reduction <add>, %87, %cst_36 [1] : vector<32x128xf32> to vector<32xf32>
    %89 = vector.shape_cast %88 : vector<32xf32> to vector<32x1xf32>
    %cst_37 = arith.constant 3.200000e+01 : f32
    %90 = vector.broadcast %cst_37 : f32 to vector<32x1xf32>
    %91 = arith.divf %86, %90 : vector<32x1xf32>
    %cst_38 = arith.constant 3.200000e+01 : f32
    %92 = vector.broadcast %cst_38 : f32 to vector<32x1xf32>
    %93 = arith.divf %89, %92 : vector<32x1xf32>
    %94 = arith.mulf %91, %91 : vector<32x1xf32>
    %95 = arith.subf %93, %94 : vector<32x1xf32>
    %96 = vector.broadcast %91 : vector<32x1xf32> to vector<32x128xf32>
    %97 = arith.subf %84, %96 : vector<32x128xf32>
    %cst_39 = arith.constant 9.99999974E-6 : f32
    %98 = vector.broadcast %cst_39 : f32 to vector<32x1xf32>
    %99 = arith.addf %95, %98 : vector<32x1xf32>
    %100 = math.rsqrt %99 : vector<32x1xf32>
    %101 = vector.broadcast %100 : vector<32x1xf32> to vector<32x128xf32>
    %102 = arith.mulf %97, %101 : vector<32x128xf32>
    %103 = vector.broadcast %11 : vector<1x128xf32> to vector<32x128xf32>
    %104 = arith.mulf %102, %103 : vector<32x128xf32>
    %105 = vector.broadcast %12 : vector<1x128xf32> to vector<32x128xf32>
    %106 = arith.addf %104, %105 : vector<32x128xf32>
    %107 = vector.shape_cast %106 : vector<32x128xf32> to vector<2x16x128xf32>
    %c0_40 = arith.constant 0 : index
    %c0_41 = arith.constant 0 : index
    %c0_42 = arith.constant 0 : index
    %108 = vector.load %arg11[%c0_40, %c0_41, %c0_42] : memref<2x16x128xf32, #tpu.memory_space<vmem>>, vector<2x16x128xf32>
    tpu.vector_store %arg11[%c0_40, %c0_41, %c0_42], %107 {strides = array<i32>} : memref<2x16x128xf32, #tpu.memory_space<vmem>>, vector<2x16x128xf32>,
    %c1_i32 = arith.constant 1 : i32
    %109 = arith.cmpi eq, %arg1, %c1_i32 : i32
    %110 = arith.extui %109 : i1 to i32
    %c0_i32_43 = arith.constant 0 : i32
    %111 = arith.cmpi ne, %110, %c0_i32_43 : i32
    scf.if %111 {
      %c0_44 = arith.constant 0 : index
      %c0_45 = arith.constant 0 : index
      %c0_46 = arith.constant 0 : index
      %112 = vector.load %arg9[%c0_44, %c0_45, %c0_46] : memref<1x2x128xf32, #tpu.memory_space<vmem>>, vector<1x2x128xf32>
      %113 = vector.shape_cast %112 : vector<1x2x128xf32> to vector<2x128xf32>
      %114 = vector.extract_strided_slice %113 {offsets = [0, 0], sizes = [1, 128], strides = [1, 1]} : vector<2x128xf32> to vector<1x128xf32>
      %115 = vector.extract_strided_slice %113 {offsets = [1, 0], sizes = [1, 128], strides = [1, 1]} : vector<2x128xf32> to vector<1x128xf32>
      %cst_47 = arith.constant dense<0.000000e+00> : vector<32xf32>
      %116 = vector.multi_reduction <add>, %106, %cst_47 [1] : vector<32x128xf32> to vector<32xf32>
      %117 = vector.shape_cast %116 : vector<32xf32> to vector<32x1xf32>
      %118 = arith.mulf %106, %106 : vector<32x128xf32>
      %cst_48 = arith.constant dense<0.000000e+00> : vector<32xf32>
      %119 = vector.multi_reduction <add>, %118, %cst_48 [1] : vector<32x128xf32> to vector<32xf32>
      %120 = vector.shape_cast %119 : vector<32xf32> to vector<32x1xf32>
      %cst_49 = arith.constant 3.200000e+01 : f32
      %121 = vector.broadcast %cst_49 : f32 to vector<32x1xf32>
      %122 = arith.divf %117, %121 : vector<32x1xf32>
      %cst_50 = arith.constant 3.200000e+01 : f32
      %123 = vector.broadcast %cst_50 : f32 to vector<32x1xf32>
      %124 = arith.divf %120, %123 : vector<32x1xf32>
      %125 = arith.mulf %122, %122 : vector<32x1xf32>
      %126 = arith.subf %124, %125 : vector<32x1xf32>
      %127 = vector.broadcast %122 : vector<32x1xf32> to vector<32x128xf32>
      %128 = arith.subf %106, %127 : vector<32x128xf32>
      %cst_51 = arith.constant 9.99999974E-6 : f32
      %129 = vector.broadcast %cst_51 : f32 to vector<32x1xf32>
      %130 = arith.addf %126, %129 : vector<32x1xf32>
      %131 = math.rsqrt %130 : vector<32x1xf32>
      %132 = vector.broadcast %131 : vector<32x1xf32> to vector<32x128xf32>
      %133 = arith.mulf %128, %132 : vector<32x128xf32>
      %134 = vector.broadcast %114 : vector<1x128xf32> to vector<32x128xf32>
      %135 = arith.mulf %133, %134 : vector<32x128xf32>
      %136 = vector.broadcast %115 : vector<1x128xf32> to vector<32x128xf32>
      %137 = arith.addf %135, %136 : vector<32x128xf32>
      %138 = vector.shape_cast %137 : vector<32x128xf32> to vector<2x16x128xf32>
      %c0_52 = arith.constant 0 : index
      %c0_53 = arith.constant 0 : index
      %c0_54 = arith.constant 0 : index
      %139 = vector.load %arg10[%c0_52, %c0_53, %c0_54] : memref<2x16x128xf32, #tpu.memory_space<vmem>>, vector<2x16x128xf32>
      tpu.vector_store %arg10[%c0_52, %c0_53, %c0_54], %138 {strides = array<i32>} : memref<2x16x128xf32, #tpu.memory_space<vmem>>, vector<2x16x128xf32>,
    } else {
    }
    return
  }
  func.func @transform_0(%arg0: i32, %arg1: i32) -> (i32, i32, i32) {
    %c0_i32 = arith.constant 0 : i32
    %c0_i32_0 = arith.constant 0 : i32
    %c0_i32_1 = arith.constant 0 : i32
    return %arg0, %c0_i32, %c0_i32_0 : i32, i32, i32
  }
  func.func @transform_1(%arg0: i32, %arg1: i32) -> (i32, i32, i32) {
    %c0_i32 = arith.constant 0 : i32
    %c0_i32_0 = arith.constant 0 : i32
    %c0_i32_1 = arith.constant 0 : i32
    return %arg1, %c0_i32, %c0_i32_0 : i32, i32, i32
  }
  func.func @transform_2(%arg0: i32, %arg1: i32) -> (i32, i32, i32) {
    %c0_i32 = arith.constant 0 : i32
    %c0_i32_0 = arith.constant 0 : i32
    %c0_i32_1 = arith.constant 0 : i32
    return %arg1, %c0_i32, %c0_i32_0 : i32, i32, i32
  }
  func.func @transform_3(%arg0: i32, %arg1: i32) -> (i32, i32, i32) {
    %c0_i32 = arith.constant 0 : i32
    %c0_i32_0 = arith.constant 0 : i32
    %c0_i32_1 = arith.constant 0 : i32
    return %arg1, %c0_i32, %c0_i32_0 : i32, i32, i32
  }
  func.func @transform_4(%arg0: i32, %arg1: i32) -> (i32, i32, i32) {
    %c0_i32 = arith.constant 0 : i32
    %c0_i32_0 = arith.constant 0 : i32
    %c0_i32_1 = arith.constant 0 : i32
    return %arg1, %c0_i32, %c0_i32_0 : i32, i32, i32
  }
  func.func @transform_5(%arg0: i32, %arg1: i32) -> (i32, i32, i32) {
    %c0_i32 = arith.constant 0 : i32
    %c0_i32_0 = arith.constant 0 : i32
    %c0_i32_1 = arith.constant 0 : i32
    return %arg1, %c0_i32, %c0_i32_0 : i32, i32, i32
  }
  func.func @transform_6(%arg0: i32, %arg1: i32) -> (i32, i32, i32) {
    %c0_i32 = arith.constant 0 : i32
    %c0_i32_0 = arith.constant 0 : i32
    %c0_i32_1 = arith.constant 0 : i32
    return %arg1, %c0_i32, %c0_i32_0 : i32, i32, i32
  }
  func.func @transform_7(%arg0: i32, %arg1: i32) -> (i32, i32, i32) {
    %c0_i32 = arith.constant 0 : i32
    %c0_i32_0 = arith.constant 0 : i32
    %c0_i32_1 = arith.constant 0 : i32
    %c0_i32_2 = arith.constant 0 : i32
    return %c0_i32, %c0_i32_0, %c0_i32_1 : i32, i32, i32
  }
  func.func @transform_8(%arg0: i32, %arg1: i32) -> (i32, i32, i32) {
    %c0_i32 = arith.constant 0 : i32
    %c0_i32_0 = arith.constant 0 : i32
    %c0_i32_1 = arith.constant 0 : i32
    return %arg0, %c0_i32, %c0_i32_0 : i32, i32, i32
  }
}

</mosaic_0001>

<llo_original>
// kernel: tpu_custom_call.1
$region0: #{tpu_custom_call.1}
  #allocation0 [shape = 'u32[]', space=smem, size = 0x4, offset = 0x4, fixed_abs, tag = 'smem constant byte address 0x4 - core index']
  #allocation1 [shape = 'u32[72,128]{1,0:T(1,128)}', space=vmem, size = 0x9000, scoped, tag = 'internal scratch']
  #allocation2 [shape = 'f32[2,16,128]{2,1,0:T(8,128)}', space=vmem, size = 0x4000, scoped, tag = 'scratch operand']
  %s0 = inlined_call_operand.hbm [shape: f32[2,16,128], index: 0, kind: input, shape index: {}]
  %s1 = inlined_call_operand.hbm [shape: bf16[2,128,384], index: 1, kind: input, shape index: {}]
  %s2 = inlined_call_operand.hbm [shape: bf16[2,128,128], index: 2, kind: input, shape index: {}]
  %s3 = inlined_call_operand.hbm [shape: bf16[2,128,128], index: 3, kind: input, shape index: {}]
  %s4 = inlined_call_operand.vmem [shape: f32[2,1,128], index: 4, kind: input, shape index: {}]
  %s5 = inlined_call_operand.hbm [shape: bf16[2,128,128], index: 5, kind: input, shape index: {}]
  %s6 = inlined_call_operand.vmem [shape: f32[2,5,128], index: 6, kind: input, shape index: {}]
  %s7 = inlined_call_operand.vmem [shape: f32[1,2,128], index: 7, kind: input, shape index: {}]
  %s8 = inlined_call_operand.hbm [shape: f32[2,16,128], index: 8, kind: output, shape index: {}]
  %s9 = sld [smem:[#allocation0]]
  $region93: #{tpu_custom_call.1} parent=0
    _
  %s11 = ssub.s32 1, %s9
  %s12 = scalar_select 0, %s11, %s9
  $region1: #{tpu_custom_call.1} parent=0
    #allocation3 [shape = 'u8[16384]{0}', space=vmem, size = 0x4000, scoped, tag = 'input window, operand 0, single buffered']
    #allocation4 [shape = 's32[2]{0}', space=sflag, size = 0x8, scoped, tag = 'scoped memory for tpu_custom_call.1']
    #allocation5 [shape = 's32[2]{0}', space=sflag, size = 0x8, scoped, tag = 'scoped memory for tpu_custom_call.1']
    #allocation6 [shape = 'u8[196608]{0}', space=vmem, size = 0x30000, scoped, tag = 'input window, operand 1']
    #allocation7 [shape = 's32[2]{0}', space=sflag, size = 0x8, scoped, tag = 'scoped memory for tpu_custom_call.1']
    #allocation8 [shape = 'u8[65536]{0}', space=vmem, size = 0x10000, scoped, tag = 'input window, operand 2']
    #allocation9 [shape = 'u8[65536]{0}', space=vmem, size = 0x10000, scoped, tag = 'input window, operand 3']
    #allocation10 [shape = 's32[2]{0}', space=sflag, size = 0x8, scoped, tag = 'scoped memory for tpu_custom_call.1']
    #allocation11 [shape = 'u8[65536]{0}', space=vmem, size = 0x10000, scoped, tag = 'input window, operand 5']
    #allocation12 [shape = 'u8[16384]{0}', space=vmem, size = 0x4000, scoped, tag = 'output window, operand 0, single buffered']
    %13 = vsyncpa [#allocation4], 0
    %14 = vsyncpa [#allocation7], 0
    %s15 = scalar_lea.sflag [#allocation7], 1
    %16 = vsyncpa %s15, 0
    %17 = vsyncpa [#allocation10], 0
    %s18 = scalar_lea.sflag [#allocation10], 1
    %19 = vsyncpa %s18, 0
    %20 = vsyncpa [#allocation5], 0
    loop: start=0, step=1, limit=4
    $region2: #{tpu_custom_call.1} parent=1 // loop_pre_header
      _
    $region3: #{tpu_custom_call.1} parent=1 // loop_header
      %s22 = sphi 0, %s26
      %p23 = scmp.ge.s32.totalorder %s22, 4
      %s29 = sphi 0, %s41
      %s30 = sphi 0, %s37
      %s31 = sphi 0, %s29
      %s32 = sphi 0, %s30
      %s33 = sphi 0, %s31
      %s34 = sphi 0, %s32
      %s44 = sphi 0, %s46
      %s47 = sphi 0, %s44
      %s48 = sphi 0, %s47
      %s64 = sphi 0, %s48
      %s70 = sphi 0, %s72
      %s73 = sphi 0, %s70
      %s74 = sphi 0, %s73
      %s90 = sphi 0, %s74
      %s96 = sphi 0, %s98
      %s99 = sphi 0, %s96
      %s100 = sphi 0, %s99
      %s116 = sphi 0, %s100
      %s122 = sphi 0, %s124
      %s125 = sphi 0, %s122
      %s126 = sphi 0, %s125
      %s142 = sphi 0, %s126
      %s148 = sphi 0, %s150
      %s151 = sphi 0, %s148
      %s152 = sphi 0, %s151
      %s168 = sphi 0, %s152
      %s174 = sphi 0, %s176
      %s177 = sphi 0, %s174
      %s178 = sphi 0, %s177
      %s194 = sphi 0, %s178
      %s200 = sphi 0, %s202
      %s203 = sphi 0, %s200
      %s204 = sphi 0, %s203
      %s220 = sphi 0, %s204
      %s224 = sphi 0, %s224
      %s226 = sphi 0, %s224
      %s227 = sphi 0, %s226
      %s241 = sphi 0, %s227
      %s247 = sphi 0, %s249
      %s250 = sphi 0, %s247
      %s251 = sphi 0, %s250
      %s267 = sphi 0, %s251
    $region4: #{tpu_custom_call.1} parent=1 // loop_header_branch
      %25 = sbr.rel (%p23) target = $region8
    $region5: #{tpu_custom_call.1} parent=1 // loop_body
      %s27 = ssub.s32 %s22, 1
      %s28 = ssub.s32 %s22, 2
      %s35 = sadd.s32 1, %s30
      %p36 = scmp.ge.s32.totalorder %s35, 2
      %s37 = scalar_select %p36, 0, %s35
      %s38 = sadd.s32 1, %s29
      %s39 = scalar_select %p36, %s38, %s29
      %p40 = scmp.ge.s32.totalorder %s39, 1
      %s41 = scalar_select %p40, 0, %s39
      %s42 = ssub.s32 %s29, %s41
      %p43 = scmp.eq.s32.totalorder %s42, 0
      %s45 = sadd.s32 %s44, 1
      %s46 = scalar_select %p43, %s44, %s45
      %p49 = pneg %p43
      %p50 = scmp.eq.s32.totalorder %s22, 1
      %p51 = por %p49, %p50
      %p52 = scmp.ne.s32.totalorder %s44, %s47
      %p53 = scmp.eq.s32.totalorder %s22, 0
      %p54 = por %p52, %p53
      %p55 = scmp.ne.s32.totalorder %s44, %s47
      %p56 = scmp.eq.s32.totalorder %s27, 1
      %p57 = por %p55, %p56
      %p58 = scmp.ne.s32.totalorder %s47, %s48
      %p59 = scmp.eq.s32.totalorder %s27, 0
      %p60 = por %p58, %p59
      %p61 = scmp.ne.s32.totalorder %s47, %s48
      %p62 = scmp.eq.s32.totalorder %s28, 1
      %p63 = por %p61, %p62
      %p65 = scmp.ne.s32.totalorder %s48, %s64
      %p66 = scmp.eq.s32.totalorder %s28, 0
      %p67 = por %p65, %p66
      %s68 = ssub.s32 %s30, %s37
      %p69 = scmp.eq.s32.totalorder %s68, 0
      %s71 = sadd.s32 %s70, 1
      %s72 = scalar_select %p69, %s70, %s71
      %p75 = pneg %p69
      %p76 = scmp.eq.s32.totalorder %s22, 1
      %p77 = por %p75, %p76
      %p78 = scmp.ne.s32.totalorder %s70, %s73
      %p79 = scmp.eq.s32.totalorder %s22, 0
      %p80 = por %p78, %p79
      %p81 = scmp.ne.s32.totalorder %s70, %s73
      %p82 = scmp.eq.s32.totalorder %s27, 1
      %p83 = por %p81, %p82
      %p84 = scmp.ne.s32.totalorder %s73, %s74
      %p85 = scmp.eq.s32.totalorder %s27, 0
      %p86 = por %p84, %p85
      %p87 = scmp.ne.s32.totalorder %s73, %s74
      %p88 = scmp.eq.s32.totalorder %s28, 1
      %p89 = por %p87, %p88
      %p91 = scmp.ne.s32.totalorder %s74, %s90
      %p92 = scmp.eq.s32.totalorder %s28, 0
      %p93 = por %p91, %p92
      %s94 = ssub.s32 %s30, %s37
      %p95 = scmp.eq.s32.totalorder %s94, 0
      %s97 = sadd.s32 %s96, 1
      %s98 = scalar_select %p95, %s96, %s97
      %p101 = pneg %p95
      %p102 = scmp.eq.s32.totalorder %s22, 1
      %p103 = por %p101, %p102
      %p104 = scmp.ne.s32.totalorder %s96, %s99
      %p105 = scmp.eq.s32.totalorder %s22, 0
      %p106 = por %p104, %p105
      %p107 = scmp.ne.s32.totalorder %s96, %s99
      %p108 = scmp.eq.s32.totalorder %s27, 1
      %p109 = por %p107, %p108
      %p110 = scmp.ne.s32.totalorder %s99, %s100
      %p111 = scmp.eq.s32.totalorder %s27, 0
      %p112 = por %p110, %p111
      %p113 = scmp.ne.s32.totalorder %s99, %s100
      %p114 = scmp.eq.s32.totalorder %s28, 1
      %p115 = por %p113, %p114
      %p117 = scmp.ne.s32.totalorder %s100, %s116
      %p118 = scmp.eq.s32.totalorder %s28, 0
      %p119 = por %p117, %p118
      %s120 = ssub.s32 %s30, %s37
      %p121 = scmp.eq.s32.totalorder %s120, 0
      %s123 = sadd.s32 %s122, 1
      %s124 = scalar_select %p121, %s122, %s123
      %p127 = pneg %p121
      %p128 = scmp.eq.s32.totalorder %s22, 1
      %p129 = por %p127, %p128
      %p130 = scmp.ne.s32.totalorder %s122, %s125
      %p131 = scmp.eq.s32.totalorder %s22, 0
      %p132 = por %p130, %p131
      %p133 = scmp.ne.s32.totalorder %s122, %s125
      %p134 = scmp.eq.s32.totalorder %s27, 1
      %p135 = por %p133, %p134
      %p136 = scmp.ne.s32.totalorder %s125, %s126
      %p137 = scmp.eq.s32.totalorder %s27, 0
      %p138 = por %p136, %p137
      %p139 = scmp.ne.s32.totalorder %s125, %s126
      %p140 = scmp.eq.s32.totalorder %s28, 1
      %p141 = por %p139, %p140
      %p143 = scmp.ne.s32.totalorder %s126, %s142
      %p144 = scmp.eq.s32.totalorder %s28, 0
      %p145 = por %p143, %p144
      %s146 = ssub.s32 %s30, %s37
      %p147 = scmp.eq.s32.totalorder %s146, 0
      %s149 = sadd.s32 %s148, 1
      %s150 = scalar_select %p147, %s148, %s149
      %p153 = pneg %p147
      %p154 = scmp.eq.s32.totalorder %s22, 1
      %p155 = por %p153, %p154
      %p156 = scmp.ne.s32.totalorder %s148, %s151
      %p157 = scmp.eq.s32.totalorder %s22, 0
      %p158 = por %p156, %p157
      %p159 = scmp.ne.s32.totalorder %s148, %s151
      %p160 = scmp.eq.s32.totalorder %s27, 1
      %p161 = por %p159, %p160
      %p162 = scmp.ne.s32.totalorder %s151, %s152
      %p163 = scmp.eq.s32.totalorder %s27, 0
      %p164 = por %p162, %p163
      %p165 = scmp.ne.s32.totalorder %s151, %s152
      %p166 = scmp.eq.s32.totalorder %s28, 1
      %p167 = por %p165, %p166
      %p169 = scmp.ne.s32.totalorder %s152, %s168
      %p170 = scmp.eq.s32.totalorder %s28, 0
      %p171 = por %p169, %p170
      %s172 = ssub.s32 %s30, %s37
      %p173 = scmp.eq.s32.totalorder %s172, 0
      %s175 = sadd.s32 %s174, 1
      %s176 = scalar_select %p173, %s174, %s175
      %p179 = pneg %p173
      %p180 = scmp.eq.s32.totalorder %s22, 1
      %p181 = por %p179, %p180
      %p182 = scmp.ne.s32.totalorder %s174, %s177
      %p183 = scmp.eq.s32.totalorder %s22, 0
      %p184 = por %p182, %p183
      %p185 = scmp.ne.s32.totalorder %s174, %s177
      %p186 = scmp.eq.s32.totalorder %s27, 1
      %p187 = por %p185, %p186
      %p188 = scmp.ne.s32.totalorder %s177, %s178
      %p189 = scmp.eq.s32.totalorder %s27, 0
      %p190 = por %p188, %p189
      %p191 = scmp.ne.s32.totalorder %s177, %s178
      %p192 = scmp.eq.s32.totalorder %s28, 1
      %p193 = por %p191, %p192
      %p195 = scmp.ne.s32.totalorder %s178, %s194
      %p196 = scmp.eq.s32.totalorder %s28, 0
      %p197 = por %p195, %p196
      %s198 = ssub.s32 %s30, %s37
      %p199 = scmp.eq.s32.totalorder %s198, 0
      %s201 = sadd.s32 %s200, 1
      %s202 = scalar_select %p199, %s200, %s201
      %p205 = pneg %p199
      %p206 = scmp.eq.s32.totalorder %s22, 1
      %p207 = por %p205, %p206
      %p208 = scmp.ne.s32.totalorder %s200, %s203
      %p209 = scmp.eq.s32.totalorder %s22, 0
      %p210 = por %p208, %p209
      %p211 = scmp.ne.s32.totalorder %s200, %s203
      %p212 = scmp.eq.s32.totalorder %s27, 1
      %p213 = por %p211, %p212
      %p214 = scmp.ne.s32.totalorder %s203, %s204
      %p215 = scmp.eq.s32.totalorder %s27, 0
      %p216 = por %p214, %p215
      %p217 = scmp.ne.s32.totalorder %s203, %s204
      %p218 = scmp.eq.s32.totalorder %s28, 1
      %p219 = por %p217, %p218
      %p221 = scmp.ne.s32.totalorder %s204, %s220
      %p222 = scmp.eq.s32.totalorder %s28, 0
      %p223 = por %p221, %p222
      %s225 = sadd.s32 %s224, 1
      %p228 = scmp.eq.s32.totalorder %s22, 1
      %p229 = scmp.ne.s32.totalorder %s224, %s226
      %p230 = scmp.eq.s32.totalorder %s22, 0
      %p231 = por %p229, %p230
      %p232 = scmp.ne.s32.totalorder %s224, %s226
      %p233 = scmp.eq.s32.totalorder %s27, 1
      %p234 = por %p232, %p233
      %p235 = scmp.ne.s32.totalorder %s226, %s227
      %p236 = scmp.eq.s32.totalorder %s27, 0
      %p237 = por %p235, %p236
      %p238 = scmp.ne.s32.totalorder %s226, %s227
      %p239 = scmp.eq.s32.totalorder %s28, 1
      %p240 = por %p238, %p239
      %p242 = scmp.ne.s32.totalorder %s227, %s241
      %p243 = scmp.eq.s32.totalorder %s28, 0
      %p244 = por %p242, %p243
      %s245 = ssub.s32 %s29, %s41
      %p246 = scmp.eq.s32.totalorder %s245, 0
      %s248 = sadd.s32 %s247, 1
      %s249 = scalar_select %p246, %s247, %s248
      %p252 = pneg %p246
      %p253 = scmp.eq.s32.totalorder %s22, 1
      %p254 = por %p252, %p253
      %p255 = scmp.ne.s32.totalorder %s247, %s250
      %p256 = scmp.eq.s32.totalorder %s22, 0
      %p257 = por %p255, %p256
      %p258 = scmp.ne.s32.totalorder %s247, %s250
      %p259 = scmp.eq.s32.totalorder %s27, 1
      %p260 = por %p258, %p259
      %p261 = scmp.ne.s32.totalorder %s250, %s251
      %p262 = scmp.eq.s32.totalorder %s27, 0
      %p263 = por %p261, %p262
      %p264 = scmp.ne.s32.totalorder %s250, %s251
      %p265 = scmp.eq.s32.totalorder %s28, 1
      %p266 = por %p264, %p265
      %p268 = scmp.ne.s32.totalorder %s251, %s267
      %p269 = scmp.eq.s32.totalorder %s28, 0
      %p270 = por %p268, %p269
      %p271 = scmp.le.s32.totalorder 1, %s22
      %p272 = scmp.lt.s32.totalorder %s22, 3
      %p273 = pnand %p271, %p272
      %p274 = pneg %p273
      // Predicated region
      $region9: #{tpu_custom_call.1} parent=5 // pred_check
        _
      $region10: #{tpu_custom_call.1} parent=5 // pred_check_branch
        %276 = sbr.rel (%p273) target = $region12
      $region11: #{tpu_custom_call.1} parent=5 // pred_region
        %s277 = ssub.s32 %s22, 1
        // Predicated region
        $region13: #{tpu_custom_call.1} parent=11 // pred_check
          %p278 = pneg %p60
        $region14: #{tpu_custom_call.1} parent=11 // pred_check_branch
          %280 = sbr.rel (%p278) target = $region16
        $region15: #{tpu_custom_call.1} parent=11 // pred_region
          %s281 = smul.u32 2, %s31
          %283 = vsyncadd [#allocation4], 0
          %s284 = smul.addr %s281, 2
          %s285 = smul.addr %s284, 8
          %s286 = scalar_lea.hbm %s0, %s285
          %s287 = sshll.u32 %s286, 4
          %s288 = int_to_ptr.hbm [resolvable:$true] %s287
          %s289 = sshll.u32 [#allocation3], 4
          %s290 = int_to_ptr.vmem [resolvable:$true] %s289
          %295 = dma.hbm_to_vmem [thread:$0]  %s288, 512, %s290, [#allocation4], 128, 128, 8
        $region16: #{tpu_custom_call.1} parent=11 // pred_fallthru
          _
        // Predicated region
        $region17: #{tpu_custom_call.1} parent=11 // pred_check
          %p296 = pneg %p237
        $region18: #{tpu_custom_call.1} parent=11 // pred_check_branch
          %298 = sbr.rel (%p296) target = $region20
        $region19: #{tpu_custom_call.1} parent=11 // pred_region
          _
        $region20: #{tpu_custom_call.1} parent=11 // pred_fallthru
          _
      $region12: #{tpu_custom_call.1} parent=5 // pred_fallthru
        _
      %p299 = scmp.lt.s32.totalorder %s22, 2
      // Predicated region
      $region21: #{tpu_custom_call.1} parent=5 // pred_check
        %p300 = pneg %p299
      $region22: #{tpu_custom_call.1} parent=5 // pred_check_branch
        %302 = sbr.rel (%p300) target = $region24
      $region23: #{tpu_custom_call.1} parent=5 // pred_region
        // Predicated region
        $region25: #{tpu_custom_call.1} parent=23 // pred_check
          %p303 = pneg %p80
        $region26: #{tpu_custom_call.1} parent=23 // pred_check_branch
          %305 = sbr.rel (%p303) target = $region28
        $region27: #{tpu_custom_call.1} parent=23 // pred_region
          %s306 = sand.u32 %s22, 1
          %s307 = scalar_lea.sflag [#allocation7], %s306
          %s308 = sand.u32 %s70, 1
          %s309 = smul.addr %s308, 192
          %s310 = scalar_lea.vmem [#allocation6], %s309
          %312 = vsyncadd %s307, 0
          %s313 = smul.addr %s30, 48
          %s314 = smul.addr %s313, 4
          %s315 = scalar_lea.hbm %s1, %s314
          %s316 = sshll.u32 %s315, 4
          %s317 = int_to_ptr.hbm [resolvable:$true] %s316
          %s318 = sshll.u32 %s310, 4
          %s319 = int_to_ptr.vmem [resolvable:$true] %s318
          %324 = dma.hbm_to_vmem [thread:$0]  %s317, 3072, %s319, %s307, 192, 192, 12
        $region28: #{tpu_custom_call.1} parent=23 // pred_fallthru
          _
        // Predicated region
        $region29: #{tpu_custom_call.1} parent=23 // pred_check
          %p325 = pneg %p106
        $region30: #{tpu_custom_call.1} parent=23 // pred_check_branch
          %327 = sbr.rel (%p325) target = $region32
        $region31: #{tpu_custom_call.1} parent=23 // pred_region
          %s328 = sand.u32 %s22, 1
          %s329 = scalar_lea.sflag [#allocation7], %s328
          %s330 = sand.u32 %s96, 1
          %s331 = smul.addr %s330, 64
          %s332 = scalar_lea.vmem [#allocation8], %s331
          %334 = vsyncadd %s329, 0
          %s335 = smul.addr %s30, 16
          %s336 = smul.addr %s335, 4
          %s337 = scalar_lea.hbm %s2, %s336
          %s338 = sshll.u32 %s337, 4
          %s339 = int_to_ptr.hbm [resolvable:$true] %s338
          %s340 = sshll.u32 %s332, 4
          %s341 = int_to_ptr.vmem [resolvable:$true] %s340
          %346 = dma.hbm_to_vmem [thread:$0]  %s339, 1024, %s341, %s329, 64, 64, 4
        $region32: #{tpu_custom_call.1} parent=23 // pred_fallthru
          _
        // Predicated region
        $region33: #{tpu_custom_call.1} parent=23 // pred_check
          %p347 = pneg %p132
        $region34: #{tpu_custom_call.1} parent=23 // pred_check_branch
          %349 = sbr.rel (%p347) target = $region36
        $region35: #{tpu_custom_call.1} parent=23 // pred_region
          %s350 = sand.u32 %s22, 1
          %s351 = scalar_lea.sflag [#allocation10], %s350
          %s352 = sand.u32 %s122, 1
          %s353 = smul.addr %s352, 64
          %s354 = scalar_lea.vmem [#allocation9], %s353
          %356 = vsyncadd %s351, 0
          %s357 = smul.addr %s30, 16
          %s358 = smul.addr %s357, 4
          %s359 = scalar_lea.hbm %s3, %s358
          %s360 = sshll.u32 %s359, 4
          %s361 = int_to_ptr.hbm [resolvable:$true] %s360
          %s362 = sshll.u32 %s354, 4
          %s363 = int_to_ptr.vmem [resolvable:$true] %s362
          %368 = dma.hbm_to_vmem [thread:$0]  %s361, 1024, %s363, %s351, 64, 64, 4
        $region36: #{tpu_custom_call.1} parent=23 // pred_fallthru
          _
        // Predicated region
        $region37: #{tpu_custom_call.1} parent=23 // pred_check
          %p369 = pneg %p158
        $region38: #{tpu_custom_call.1} parent=23 // pred_check_branch
          %371 = sbr.rel (%p369) target = $region40
        $region39: #{tpu_custom_call.1} parent=23 // pred_region
          %p372 = scmp.lt.s32.totalorder %s30, 1
          %s373 = scalar_select %p372, %s30, 1
          %s374 = scalar_lea.vmem %s4, %s373
        $region40: #{tpu_custom_call.1} parent=23 // pred_fallthru
          _
        // Predicated region
        $region41: #{tpu_custom_call.1} parent=23 // pred_check
          %p375 = pneg %p184
        $region42: #{tpu_custom_call.1} parent=23 // pred_check_branch
          %377 = sbr.rel (%p375) target = $region44
        $region43: #{tpu_custom_call.1} parent=23 // pred_region
          %s378 = sand.u32 %s22, 1
          %s379 = scalar_lea.sflag [#allocation10], %s378
          %s380 = sand.u32 %s174, 1
          %s381 = smul.addr %s380, 64
          %s382 = scalar_lea.vmem [#allocation11], %s381
          %384 = vsyncadd %s379, 0
          %s385 = smul.addr %s30, 16
          %s386 = smul.addr %s385, 4
          %s387 = scalar_lea.hbm %s5, %s386
          %s388 = sshll.u32 %s387, 4
          %s389 = int_to_ptr.hbm [resolvable:$true] %s388
          %s390 = sshll.u32 %s382, 4
          %s391 = int_to_ptr.vmem [resolvable:$true] %s390
          %396 = dma.hbm_to_vmem [thread:$0]  %s389, 1024, %s391, %s379, 64, 64, 4
        $region44: #{tpu_custom_call.1} parent=23 // pred_fallthru
          _
        // Predicated region
        $region45: #{tpu_custom_call.1} parent=23 // pred_check
          %p397 = pneg %p210
        $region46: #{tpu_custom_call.1} parent=23 // pred_check_branch
          %399 = sbr.rel (%p397) target = $region48
        $region47: #{tpu_custom_call.1} parent=23 // pred_region
          %p400 = scmp.lt.s32.totalorder %s30, 1
          %s401 = scalar_select %p400, %s30, 1
          %s402 = smul.addr %s401, 8
          %s403 = scalar_lea.vmem %s6, %s402
        $region48: #{tpu_custom_call.1} parent=23 // pred_fallthru
          _
      $region24: #{tpu_custom_call.1} parent=5 // pred_fallthru
        _
      %p404 = scmp.le.s32.totalorder 1, %s22
      %p405 = scmp.lt.s32.totalorder %s22, 3
      %p406 = pnand %p404, %p405
      %p407 = pneg %p406
      // Predicated region
      $region49: #{tpu_custom_call.1} parent=5 // pred_check
        _
      $region50: #{tpu_custom_call.1} parent=5 // pred_check_branch
        %409 = sbr.rel (%p406) target = $region52
      $region51: #{tpu_custom_call.1} parent=5 // pred_region
        %s410 = ssub.s32 %s22, 1
        // Predicated region
        $region53: #{tpu_custom_call.1} parent=51 // pred_check
          %p411 = pneg %p60
        $region54: #{tpu_custom_call.1} parent=51 // pred_check_branch
          %413 = sbr.rel (%p411) target = $region56
        $region55: #{tpu_custom_call.1} parent=51 // pred_region
          %415 = dma.done [#allocation4], 512
        $region56: #{tpu_custom_call.1} parent=51 // pred_fallthru
          _
        %s416 = sand.u32 %s27, 1
        %s417 = scalar_lea.sflag [#allocation7], %s416
        %s418 = sand.u32 %s73, 1
        %s419 = smul.addr %s418, 192
        %s420 = scalar_lea.vmem [#allocation6], %s419
        // Predicated region
        $region57: #{tpu_custom_call.1} parent=51 // pred_check
          %p421 = pneg %p86
        $region58: #{tpu_custom_call.1} parent=51 // pred_check_branch
          %423 = sbr.rel (%p421) target = $region60
        $region59: #{tpu_custom_call.1} parent=51 // pred_region
          %425 = dma.done %s417, 3072
        $region60: #{tpu_custom_call.1} parent=51 // pred_fallthru
          _
        %s426 = sand.u32 %s27, 1
        %s427 = scalar_lea.sflag [#allocation7], %s426
        %s428 = sand.u32 %s99, 1
        %s429 = smul.addr %s428, 64
        %s430 = scalar_lea.vmem [#allocation8], %s429
        // Predicated region
        $region61: #{tpu_custom_call.1} parent=51 // pred_check
          %p431 = pneg %p112
        $region62: #{tpu_custom_call.1} parent=51 // pred_check_branch
          %433 = sbr.rel (%p431) target = $region64
        $region63: #{tpu_custom_call.1} parent=51 // pred_region
          %435 = dma.done %s427, 1024
        $region64: #{tpu_custom_call.1} parent=51 // pred_fallthru
          _
        %s436 = sand.u32 %s27, 1
        %s437 = scalar_lea.sflag [#allocation10], %s436
        %s438 = sand.u32 %s125, 1
        %s439 = smul.addr %s438, 64
        %s440 = scalar_lea.vmem [#allocation9], %s439
        // Predicated region
        $region65: #{tpu_custom_call.1} parent=51 // pred_check
          %p441 = pneg %p138
        $region66: #{tpu_custom_call.1} parent=51 // pred_check_branch
          %443 = sbr.rel (%p441) target = $region68
        $region67: #{tpu_custom_call.1} parent=51 // pred_region
          %445 = dma.done %s437, 1024
        $region68: #{tpu_custom_call.1} parent=51 // pred_fallthru
          _
        %s446 = sand.u32 %s27, 1
        %s447 = scalar_lea.sflag [#allocation10], %s446
        %s448 = sand.u32 %s177, 1
        %s449 = smul.addr %s448, 64
        %s450 = scalar_lea.vmem [#allocation11], %s449
        // Predicated region
        $region69: #{tpu_custom_call.1} parent=51 // pred_check
          %p451 = pneg %p190
        $region70: #{tpu_custom_call.1} parent=51 // pred_check_branch
          %453 = sbr.rel (%p451) target = $region72
        $region71: #{tpu_custom_call.1} parent=51 // pred_region
          %455 = dma.done %s447, 1024
        $region72: #{tpu_custom_call.1} parent=51 // pred_fallthru
          _
        %p456 = pneg %p60
        %p457 = pneg %p57
        %s458 = sand.u32 %s27, 1
        %s459 = scalar_lea.sflag [#allocation7], %s458
        %s460 = sand.u32 %s73, 1
        %s461 = smul.addr %s460, 192
        %s462 = scalar_lea.vmem [#allocation6], %s461
        %p463 = pneg %p86
        %p464 = pneg %p83
        %s465 = sand.u32 %s27, 1
        %s466 = scalar_lea.sflag [#allocation7], %s465
        %s467 = sand.u32 %s99, 1
        %s468 = smul.addr %s467, 64
        %s469 = scalar_lea.vmem [#allocation8], %s468
        %p470 = pneg %p112
        %p471 = pneg %p109
        %s472 = sand.u32 %s27, 1
        %s473 = scalar_lea.sflag [#allocation10], %s472
        %s474 = sand.u32 %s125, 1
        %s475 = smul.addr %s474, 64
        %s476 = scalar_lea.vmem [#allocation9], %s475
        %p477 = pneg %p138
        %p478 = pneg %p135
        %p479 = scmp.lt.s32.totalorder %s32, 1
        %s480 = scalar_select %p479, %s32, 1
        %s481 = scalar_lea.vmem %s4, %s480
        %p482 = pneg %p164
        %p483 = pneg %p161
        %s484 = sand.u32 %s27, 1
        %s485 = scalar_lea.sflag [#allocation10], %s484
        %s486 = sand.u32 %s177, 1
        %s487 = smul.addr %s486, 64
        %s488 = scalar_lea.vmem [#allocation11], %s487
        %p489 = pneg %p190
        %p490 = pneg %p187
        %p491 = scmp.lt.s32.totalorder %s32, 1
        %s492 = scalar_select %p491, %s32, 1
        %s493 = smul.addr %s492, 8
        %s494 = scalar_lea.vmem %s6, %s493
        %p495 = pneg %p216
        %p496 = pneg %p213
        %p497 = pneg %p237
        %p498 = pneg %p234
        %p499 = pneg %p263
        %p500 = pneg %p260
        %s501 = smul.u32 2, %s31
        %p502 = scmp.lt.s32.totalorder %s32, 1
        %s503 = scalar_select %p502, %s32, 1
        %s504 = scalar_lea.vmem %s4, %s503
        %p505 = scmp.lt.s32.totalorder %s32, 1
        %s506 = scalar_select %p505, %s32, 1
        %s507 = smul.addr %s506, 8
        %s508 = scalar_lea.vmem %s6, %s507
        %s509 = smul.u32 2, %s31
        %p511 = scmp.eq.s32.totalorder %s32, 0
        // Predicated region
        $region73: #{tpu_custom_call.1} parent=51 // pred_check
          %p512 = pneg %p511
        $region74: #{tpu_custom_call.1} parent=51 // pred_check_branch
          %514 = sbr.rel (%p512) target = $region76
        $region75: #{tpu_custom_call.1} parent=51 // pred_region
          %v515 = vld [vmem:[#allocation3] sm:$0xff]
          %v516 = vld [vmem:[#allocation3 + $0x8] sm:$0xff]
          %v517 = vld [vmem:[#allocation3 + $0x10] sm:$0xff]
          %v518 = vld [vmem:[#allocation3 + $0x18] sm:$0xff]
          %519 = vst [vmem:[#allocation2] sm:$0xff] %v515
          %520 = vst [vmem:[#allocation2 + $0x8] sm:$0xff] %v516
          %521 = vst [vmem:[#allocation2 + $0x10] sm:$0xff] %v517
          %522 = vst [vmem:[#allocation2 + $0x18] sm:$0xff] %v518
        $region76: #{tpu_custom_call.1} parent=51 // pred_fallthru
          _
        %v523 = vld [vmem:[#allocation2] sm:$0xff]
        %v524 = vld [vmem:[#allocation2 + $0x8] sm:$0xff]
        %v525 = vld [vmem:[#allocation2 + $0x10] sm:$0xff]
        %v526 = vld [vmem:[#allocation2 + $0x18] sm:$0xff]
        %v527 = vpack.c.bf16 %v524, %v523
        %v528 = vpack.c.bf16 %v526, %v525
        %v529 = vld [vmem:[%s508] sm:$0x1f]
        %v530 = vld [vmem:[%s420] sm:$0xff]
        %v531 = vld [vmem:[%s420 + $0x8] sm:$0xf]
        %v532 = vld [vmem:[%s420 + $0xc] sm:$0xff]
        %v533 = vld [vmem:[%s420 + $0x14] sm:$0xf]
        %v534 = vld [vmem:[%s420 + $0x18] sm:$0xff]
        %v535 = vld [vmem:[%s420 + $0x20] sm:$0xf]
        %v536 = vld [vmem:[%s420 + $0x24] sm:$0xff]
        %v537 = vld [vmem:[%s420 + $0x2c] sm:$0xf]
        %v538 = vld [vmem:[%s420 + $0x30] sm:$0xff]
        %v539 = vld [vmem:[%s420 + $0x38] sm:$0xf]
        %v540 = vld [vmem:[%s420 + $0x3c] sm:$0xff]
        %v541 = vld [vmem:[%s420 + $0x44] sm:$0xf]
        %v542 = vld [vmem:[%s420 + $0x48] sm:$0xff]
        %v543 = vld [vmem:[%s420 + $0x50] sm:$0xf]
        %v544 = vld [vmem:[%s420 + $0x54] sm:$0xff]
        %v545 = vld [vmem:[%s420 + $0x5c] sm:$0xf]
        %v546 = vld [vmem:[%s420 + $0x60] sm:$0xff]
        %v547 = vld [vmem:[%s420 + $0x68] sm:$0xf]
        %v548 = vld [vmem:[%s420 + $0x6c] sm:$0xff]
        %v549 = vld [vmem:[%s420 + $0x74] sm:$0xf]
        %v550 = vld [vmem:[%s420 + $0x78] sm:$0xff]
        %v551 = vld [vmem:[%s420 + $0x80] sm:$0xf]
        %v552 = vld [vmem:[%s420 + $0x84] sm:$0xff]
        %v553 = vld [vmem:[%s420 + $0x8c] sm:$0xf]
        %v554 = vld [vmem:[%s420 + $0x90] sm:$0xff]
        %v555 = vld [vmem:[%s420 + $0x98] sm:$0xf]
        %v556 = vld [vmem:[%s420 + $0x9c] sm:$0xff]
        %v557 = vld [vmem:[%s420 + $0xa4] sm:$0xf]
        %v558 = vld [vmem:[%s420 + $0xa8] sm:$0xff]
        %v559 = vld [vmem:[%s420 + $0xb0] sm:$0xf]
        %v560 = vld [vmem:[%s420 + $0xb4] sm:$0xff]
        %v561 = vld [vmem:[%s420 + $0xbc] sm:$0xf]
        %v594 = vunpack.c.l.b16 %v530
        %v595 = vunpack.c.h.b16 %v530
        %v596 = vunpack.c.l.b16 %v531
        %v597 = vunpack.c.l.b16 %v532
        %v598 = vunpack.c.h.b16 %v532
        %v599 = vunpack.c.l.b16 %v533
        %v600 = vunpack.c.l.b16 %v534
        %v601 = vunpack.c.h.b16 %v534
        %v602 = vunpack.c.l.b16 %v535
        %v603 = vunpack.c.l.b16 %v536
        %v604 = vunpack.c.h.b16 %v536
        %v605 = vunpack.c.l.b16 %v537
        %v606 = vunpack.c.l.b16 %v538
        %v607 = vunpack.c.h.b16 %v538
        %v608 = vunpack.c.l.b16 %v539
        %v609 = vunpack.c.l.b16 %v540
        %v610 = vunpack.c.h.b16 %v540
        %v611 = vunpack.c.l.b16 %v541
        %v612 = vunpack.c.l.b16 %v542
        %v613 = vunpack.c.h.b16 %v542
        %v614 = vunpack.c.l.b16 %v543
        %v615 = vunpack.c.l.b16 %v544
        %v616 = vunpack.c.h.b16 %v544
        %v617 = vunpack.c.l.b16 %v545
        %v618 = vunpack.c.l.b16 %v546
        %v619 = vunpack.c.h.b16 %v546
        %v620 = vunpack.c.l.b16 %v547
        %v621 = vunpack.c.l.b16 %v548
        %v622 = vunpack.c.h.b16 %v548
        %v623 = vunpack.c.l.b16 %v549
        %v624 = vunpack.c.l.b16 %v550
        %v625 = vunpack.c.h.b16 %v550
        %v626 = vunpack.c.l.b16 %v551
        %v627 = vunpack.c.l.b16 %v552
        %v628 = vunpack.c.h.b16 %v552
        %v629 = vunpack.c.l.b16 %v553
        %v630 = vunpack.c.l.b16 %v554
        %v631 = vunpack.c.h.b16 %v554
        %v632 = vunpack.c.l.b16 %v555
        %v633 = vunpack.c.l.b16 %v556
        %v634 = vunpack.c.h.b16 %v556
        %v635 = vunpack.c.l.b16 %v557
        %v636 = vunpack.c.l.b16 %v558
        %v637 = vunpack.c.h.b16 %v558
        %v638 = vunpack.c.l.b16 %v559
        %v639 = vunpack.c.l.b16 %v560
        %v640 = vunpack.c.h.b16 %v560
        %v641 = vunpack.c.l.b16 %v561
        %v642 = vpack.c.b16 %v597, %v594
        %v643 = vpack.c.b16 %v598, %v595
        %v644 = vpack.c.b16 %v599, %v596
        %v645 = vpack.c.b16 %v603, %v600
        %v646 = vpack.c.b16 %v604, %v601
        %v647 = vpack.c.b16 %v605, %v602
        %v648 = vpack.c.b16 %v609, %v606
        %v649 = vpack.c.b16 %v610, %v607
        %v650 = vpack.c.b16 %v611, %v608
        %v651 = vpack.c.b16 %v615, %v612
        %v652 = vpack.c.b16 %v616, %v613
        %v653 = vpack.c.b16 %v617, %v614
        %v654 = vpack.c.b16 %v621, %v618
        %v655 = vpack.c.b16 %v622, %v619
        %v656 = vpack.c.b16 %v623, %v620
        %v657 = vpack.c.b16 %v627, %v624
        %v658 = vpack.c.b16 %v628, %v625
        %v659 = vpack.c.b16 %v629, %v626
        %v660 = vpack.c.b16 %v633, %v630
        %v661 = vpack.c.b16 %v634, %v631
        %v662 = vpack.c.b16 %v635, %v632
        %v663 = vpack.c.b16 %v639, %v636
        %v664 = vpack.c.b16 %v640, %v637
        %v665 = vpack.c.b16 %v641, %v638
        %690 = vmatpush.bf16.msra.mxu0 %v663
        %691 = vmatpush.bf16.msra.mxu0 %v660
        %692 = vmatpush.bf16.msra.mxu0 %v657
        %693 = vmatpush.bf16.msra.mxu0 %v654
        %694 = vmatpush.bf16.msra.mxu0 %v651
        %695 = vmatpush.bf16.msra.mxu0 %v648
        %696 = vmatpush.bf16.msra.mxu0 %v645
        %697 = vmatpush.bf16.msra.mxu0 %v642
        %698 = vmatmul.bf16.gmra.mxu0 %v527
        %v699 = vpop.f32.mrf.mxu0
        %v700 = vadd.f32 0.0, %v699
        %v701 = vpop.f32.mrf.mxu0
        %v702 = vadd.f32 0.0, %v701
        %703 = vmatmul.bf16.gmra.mxu0 %v528
        %v704 = vpop.f32.mrf.mxu0
        %v705 = vadd.f32 0.0, %v704
        %v706 = vpop.f32.mrf.mxu0
        %v707 = vadd.f32 0.0, %v706
        %708 = vdwg.mxu0
        %709 = vmatpush.bf16.msra.mxu0 %v664
        %710 = vmatpush.bf16.msra.mxu0 %v661
        %711 = vmatpush.bf16.msra.mxu0 %v658
        %712 = vmatpush.bf16.msra.mxu0 %v655
        %713 = vmatpush.bf16.msra.mxu0 %v652
        %714 = vmatpush.bf16.msra.mxu0 %v649
        %715 = vmatpush.bf16.msra.mxu0 %v646
        %716 = vmatpush.bf16.msra.mxu0 %v643
        %717 = vmatmul.bf16.gmra.mxu0 %v527
        %v718 = vpop.f32.mrf.mxu0
        %v719 = vadd.f32 0.0, %v718
        %v720 = vpop.f32.mrf.mxu0
        %v721 = vadd.f32 0.0, %v720
        %722 = vmatmul.bf16.gmra.mxu0 %v528
        %v723 = vpop.f32.mrf.mxu0
        %v724 = vadd.f32 0.0, %v723
        %v725 = vpop.f32.mrf.mxu0
        %v726 = vadd.f32 0.0, %v725
        %727 = vdwg.mxu0
        %728 = vmatpush.bf16.msra.mxu0 %v665
        %729 = vmatpush.bf16.msra.mxu0 %v662
        %730 = vmatpush.bf16.msra.mxu0 %v659
        %731 = vmatpush.bf16.msra.mxu0 %v656
        %732 = vmatpush.bf16.msra.mxu0 %v653
        %733 = vmatpush.bf16.msra.mxu0 %v650
        %734 = vmatpush.bf16.msra.mxu0 %v647
        %735 = vmatpush.bf16.msra.mxu0 %v644
        %736 = vmatmul.bf16.gmra.mxu0 %v527
        %v737 = vpop.f32.mrf.mxu0
        %v738 = vadd.f32 0.0, %v737
        %v739 = vpop.f32.mrf.mxu0
        %v740 = vadd.f32 0.0, %v739
        %741 = vmatmul.bf16.gmra.mxu0 %v528
        %v742 = vpop.f32.mrf.mxu0
        %v743 = vadd.f32 0.0, %v742
        %v744 = vpop.f32.mrf.mxu0
        %v745 = vadd.f32 0.0, %v744
        %746 = vdwg.mxu0
        %v747 = vmul.f32 %v700, 0.17677669
        %v748 = vmul.f32 %v702, 0.17677669
        %v749 = vmul.f32 %v705, 0.17677669
        %v750 = vmul.f32 %v707, 0.17677669
        %v751 = vpack.c.bf16 %v747, %v747
        %v752 = vpack.c.bf16 %v748, %v748
        %v753 = vpack.c.bf16 %v749, %v749
        %v754 = vpack.c.bf16 %v750, %v750
        %v755 = vpack.c.bf16 %v719, %v719
        %v756 = vpack.c.bf16 %v721, %v721
        %v757 = vpack.c.bf16 %v724, %v724
        %v758 = vpack.c.bf16 %v726, %v726
        %v759 = vpack.c.bf16 %v738, %v738
        %v760 = vpack.c.bf16 %v740, %v740
        %v761 = vpack.c.bf16 %v743, %v743
        %v762 = vpack.c.bf16 %v745, %v745
        %v765 = vunpack.c.l.b16 %v751
        %v766 = vunpack.c.l.b16 %v752
        %v767 = vpack.c.b16 %v766, %v765
        %v771 = vunpack.c.l.b16 %v755
        %v772 = vunpack.c.l.b16 %v756
        %v773 = vpack.c.b16 %v772, %v771
        %775 = vmatpush.bf16.xpose.msra.mxu0 0
        %776 = vmatpush.bf16.xpose.msra.mxu0 0
        %777 = vmatpush.bf16.xpose.msra.mxu0 0
        %778 = vmatpush.bf16.xpose.msra.mxu0 0
        %779 = vmatpush.bf16.xpose.msra.mxu0 0
        %780 = vmatpush.bf16.xpose.msra.mxu0 0
        %781 = vmatpush.bf16.xpose.msra.mxu0 0
        %782 = vmatpush.bf16.xpose.msra.mxu0 %v773
        %783 = vmatmul.bf16.gmra.mxu0 %v767
        %v784 = vpop.f32.mrf.mxu0
        %v785 = vadd.f32 0.0, %v784
        %v786 = vpop.f32.mrf.mxu0
        %v787 = vadd.f32 0.0, %v786
        %788 = vdwg.mxu0
        %v791 = vunpack.c.l.b16 %v753
        %v792 = vunpack.c.l.b16 %v754
        %v793 = vpack.c.b16 %v792, %v791
        %v797 = vunpack.c.l.b16 %v757
        %v798 = vunpack.c.l.b16 %v758
        %v799 = vpack.c.b16 %v798, %v797
        %801 = vmatpush.bf16.xpose.msra.mxu0 0
        %802 = vmatpush.bf16.xpose.msra.mxu0 0
        %803 = vmatpush.bf16.xpose.msra.mxu0 0
        %804 = vmatpush.bf16.xpose.msra.mxu0 0
        %805 = vmatpush.bf16.xpose.msra.mxu0 0
        %806 = vmatpush.bf16.xpose.msra.mxu0 0
        %807 = vmatpush.bf16.xpose.msra.mxu0 0
        %808 = vmatpush.bf16.xpose.msra.mxu0 %v799
        %809 = vmatmul.bf16.gmra.mxu0 %v793
        %v810 = vpop.f32.mrf.mxu0
        %v811 = vadd.f32 0.0, %v810
        %v812 = vpop.f32.mrf.mxu0
        %v813 = vadd.f32 0.0, %v812
        %814 = vdwg.mxu0
        %vm815 = vcmask 130048
        %v816 = vsel %vm815, %v785, -inf
        %817 = vmax.xlane.f32.xlu0 %v816
        %v818 = vpop.xlane.xlu0 %817
        %v819 = vsel %vm815, %v787, -inf
        %820 = vmax.xlane.f32.xlu0 %v819
        %v821 = vpop.xlane.xlu0 %820
        %v822 = vsel %vm815, %v811, -inf
        %823 = vmax.xlane.f32.xlu0 %v822
        %v824 = vpop.xlane.xlu0 %823
        %v825 = vsel %vm815, %v813, -inf
        %826 = vmax.xlane.f32.xlu0 %v825
        %v827 = vpop.xlane.xlu0 %826
        %v828 = vsub.f32 %v785, %v818
        %v829 = vsub.f32 %v787, %v821
        %v830 = vsub.f32 %v811, %v824
        %v831 = vsub.f32 %v813, %v827
        %v832 = vmul.f32 %v828, 1.442695
        %v833 = vpow.pop %v832
        %v834 = vmul.f32 %v829, 1.442695
        %v835 = vpow.pop %v834
        %v836 = vmul.f32 %v830, 1.442695
        %v837 = vpow.pop %v836
        %v838 = vmul.f32 %v831, 1.442695
        %v839 = vpow.pop %v838
        %v840 = vsel %vm815, %v833, 0.0
        %841 = vadd.xlane.f32.xlu0 %v840
        %v842 = vpop.xlane.xlu0 %841
        %v843 = vsel %vm815, %v835, 0.0
        %844 = vadd.xlane.f32.xlu0 %v843
        %v845 = vpop.xlane.xlu0 %844
        %v846 = vsel %vm815, %v837, 0.0
        %847 = vadd.xlane.f32.xlu0 %v846
        %v848 = vpop.xlane.xlu0 %847
        %v849 = vsel %vm815, %v839, 0.0
        %850 = vadd.xlane.f32.xlu0 %v849
        %v851 = vpop.xlane.xlu0 %850
        %v852 = vrcp.pop %v842
        %v853 = vrcp.pop %v845
        %v854 = vrcp.pop %v848
        %v855 = vrcp.pop %v851
        %v856 = vpack.c.bf16 %v833, %v833
        %v857 = vpack.c.bf16 %v835, %v835
        %v858 = vpack.c.bf16 %v837, %v837
        %v859 = vpack.c.bf16 %v839, %v839
        %v862 = vunpack.c.l.b16 %v856
        %v863 = vunpack.c.l.b16 %v857
        %v864 = vpack.c.b16 %v863, %v862
        %v867 = vunpack.c.l.b16 %v759
        %v868 = vunpack.c.l.b16 %v760
        %v869 = vpack.c.b16 %v868, %v867
        %v872 = vsel %vm815, %v864, 0
        %874 = vmatpush.bf16.msra.mxu0 0
        %875 = vmatpush.bf16.msra.mxu0 0
        %876 = vmatpush.bf16.msra.mxu0 0
        %877 = vmatpush.bf16.msra.mxu0 0
        %878 = vmatpush.bf16.msra.mxu0 0
        %879 = vmatpush.bf16.msra.mxu0 0
        %880 = vmatpush.bf16.msra.mxu0 0
        %881 = vmatpush.bf16.msra.mxu0 %v869
        %882 = vmatmul.bf16.gmra.mxu0 %v872
        %v883 = vpop.f32.mrf.mxu0
        %v884 = vadd.f32 0.0, %v883
        %v885 = vpop.f32.mrf.mxu0
        %v886 = vadd.f32 0.0, %v885
        %887 = vdwg.mxu0
        %v890 = vunpack.c.l.b16 %v858
        %v891 = vunpack.c.l.b16 %v859
        %v892 = vpack.c.b16 %v891, %v890
        %v895 = vunpack.c.l.b16 %v761
        %v896 = vunpack.c.l.b16 %v762
        %v897 = vpack.c.b16 %v896, %v895
        %v900 = vsel %vm815, %v892, 0
        %902 = vmatpush.bf16.msra.mxu0 0
        %903 = vmatpush.bf16.msra.mxu0 0
        %904 = vmatpush.bf16.msra.mxu0 0
        %905 = vmatpush.bf16.msra.mxu0 0
        %906 = vmatpush.bf16.msra.mxu0 0
        %907 = vmatpush.bf16.msra.mxu0 0
        %908 = vmatpush.bf16.msra.mxu0 0
        %909 = vmatpush.bf16.msra.mxu0 %v897
        %910 = vmatmul.bf16.gmra.mxu0 %v900
        %v911 = vpop.f32.mrf.mxu0
        %v912 = vadd.f32 0.0, %v911
        %v913 = vpop.f32.mrf.mxu0
        %v914 = vadd.f32 0.0, %v913
        %915 = vdwg.mxu0
        %v916 = vmul.f32 %v884, %v852
        %v917 = vmul.f32 %v886, %v853
        %v918 = vmul.f32 %v912, %v854
        %v919 = vmul.f32 %v914, %v855
        %v920 = vpack.c.bf16 %v917, %v916
        %v921 = vpack.c.bf16 %v919, %v918
        %v922 = vld [vmem:[%s430] sm:$0xf]
        %v923 = vld [vmem:[%s430 + $0x4] sm:$0xf]
        %v924 = vld [vmem:[%s430 + $0x8] sm:$0xf]
        %v925 = vld [vmem:[%s430 + $0xc] sm:$0xf]
        %v926 = vld [vmem:[%s430 + $0x10] sm:$0xf]
        %v927 = vld [vmem:[%s430 + $0x14] sm:$0xf]
        %v928 = vld [vmem:[%s430 + $0x18] sm:$0xf]
        %v929 = vld [vmem:[%s430 + $0x1c] sm:$0xf]
        %v930 = vld [vmem:[%s430 + $0x20] sm:$0xf]
        %v931 = vld [vmem:[%s430 + $0x24] sm:$0xf]
        %v932 = vld [vmem:[%s430 + $0x28] sm:$0xf]
        %v933 = vld [vmem:[%s430 + $0x2c] sm:$0xf]
        %v934 = vld [vmem:[%s430 + $0x30] sm:$0xf]
        %v935 = vld [vmem:[%s430 + $0x34] sm:$0xf]
        %v936 = vld [vmem:[%s430 + $0x38] sm:$0xf]
        %v937 = vld [vmem:[%s430 + $0x3c] sm:$0xf]
        %v954 = vunpack.c.l.b16 %v922
        %v955 = vunpack.c.l.b16 %v923
        %v956 = vunpack.c.l.b16 %v924
        %v957 = vunpack.c.l.b16 %v925
        %v958 = vunpack.c.l.b16 %v926
        %v959 = vunpack.c.l.b16 %v927
        %v960 = vunpack.c.l.b16 %v928
        %v961 = vunpack.c.l.b16 %v929
        %v962 = vunpack.c.l.b16 %v930
        %v963 = vunpack.c.l.b16 %v931
        %v964 = vunpack.c.l.b16 %v932
        %v965 = vunpack.c.l.b16 %v933
        %v966 = vunpack.c.l.b16 %v934
        %v967 = vunpack.c.l.b16 %v935
        %v968 = vunpack.c.l.b16 %v936
        %v969 = vunpack.c.l.b16 %v937
        %v970 = vpack.c.b16 %v955, %v954
        %v971 = vpack.c.b16 %v957, %v956
        %v972 = vpack.c.b16 %v959, %v958
        %v973 = vpack.c.b16 %v961, %v960
        %v974 = vpack.c.b16 %v963, %v962
        %v975 = vpack.c.b16 %v965, %v964
        %v976 = vpack.c.b16 %v967, %v966
        %v977 = vpack.c.b16 %v969, %v968
        %986 = vmatpush.bf16.msra.mxu0 %v977
        %987 = vmatpush.bf16.msra.mxu0 %v976
        %988 = vmatpush.bf16.msra.mxu0 %v975
        %989 = vmatpush.bf16.msra.mxu0 %v974
        %990 = vmatpush.bf16.msra.mxu0 %v973
        %991 = vmatpush.bf16.msra.mxu0 %v972
        %992 = vmatpush.bf16.msra.mxu0 %v971
        %993 = vmatpush.bf16.msra.mxu0 %v970
        %994 = vmatmul.bf16.gmra.mxu0 %v920
        %v995 = vpop.f32.mrf.mxu0
        %v996 = vadd.f32 0.0, %v995
        %v997 = vpop.f32.mrf.mxu0
        %v998 = vadd.f32 0.0, %v997
        %999 = vmatmul.bf16.gmra.mxu0 %v921
        %v1000 = vpop.f32.mrf.mxu0
        %v1001 = vadd.f32 0.0, %v1000
        %v1002 = vpop.f32.mrf.mxu0
        %v1003 = vadd.f32 0.0, %v1002
        %1004 = vdwg.mxu0
        %v1005 = vadd.f32 %v523, %v996
        %v1006 = vadd.f32 %v524, %v998
        %v1007 = vadd.f32 %v525, %v1001
        %v1008 = vadd.f32 %v526, %v1003
        %1009 = vadd.xlane.f32.xlu0 %v1005
        %v1010 = vpop.xlane.xlu0 %1009
        %1011 = vadd.xlane.f32.xlu0 %v1006
        %v1012 = vpop.xlane.xlu0 %1011
        %1013 = vadd.xlane.f32.xlu0 %v1007
        %v1014 = vpop.xlane.xlu0 %1013
        %1015 = vadd.xlane.f32.xlu0 %v1008
        %v1016 = vpop.xlane.xlu0 %1015
        %v1017 = vmul.f32 %v1005, %v1005
        %v1018 = vmul.f32 %v1006, %v1006
        %v1019 = vmul.f32 %v1007, %v1007
        %v1020 = vmul.f32 %v1008, %v1008
        %1021 = vadd.xlane.f32.xlu0 %v1017
        %v1022 = vpop.xlane.xlu0 %1021
        %1023 = vadd.xlane.f32.xlu0 %v1018
        %v1024 = vpop.xlane.xlu0 %1023
        %1025 = vadd.xlane.f32.xlu0 %v1019
        %v1026 = vpop.xlane.xlu0 %1025
        %1027 = vadd.xlane.f32.xlu0 %v1020
        %v1028 = vpop.xlane.xlu0 %1027
        %v1029 = vrcp.pop 32.0
        %v1030 = vmul.f32 32.0, %v1029
        %v1031 = vsub.f32 1.0, %v1030
        %v1032 = vmul.f32 %v1029, %v1031
        %v1033 = vadd.f32 %v1029, %v1032
        %vm1034 = vweird.f32 %v1029
        %v1035 = vsel %vm1034, %v1029, %v1033
        %v1036 = vmul.f32 %v1010, %v1035
        %v1037 = vmul.f32 %v1012, %v1035
        %v1038 = vmul.f32 %v1014, %v1035
        %v1039 = vmul.f32 %v1016, %v1035
        %v1040 = vmul.f32 %v1022, %v1035
        %v1041 = vmul.f32 %v1024, %v1035
        %v1042 = vmul.f32 %v1026, %v1035
        %v1043 = vmul.f32 %v1028, %v1035
        %v1044 = vmul.f32 %v1036, %v1036
        %v1045 = vmul.f32 %v1037, %v1037
        %v1046 = vmul.f32 %v1038, %v1038
        %v1047 = vmul.f32 %v1039, %v1039
        %v1048 = vsub.f32 %v1040, %v1044
        %v1049 = vsub.f32 %v1041, %v1045
        %v1050 = vsub.f32 %v1042, %v1046
        %v1051 = vsub.f32 %v1043, %v1047
        %v1052 = vsub.f32 %v1005, %v1036
        %v1053 = vsub.f32 %v1006, %v1037
        %v1054 = vsub.f32 %v1007, %v1038
        %v1055 = vsub.f32 %v1008, %v1039
        %v1056 = vadd.f32 %v1048, 1e-05
        %v1057 = vadd.f32 %v1049, 1e-05
        %v1058 = vadd.f32 %v1050, 1e-05
        %v1059 = vadd.f32 %v1051, 1e-05
        %v1060 = vrsqrt.pop %v1056
        %v1061 = vmul.f32 %v1060, %v1056
        %v1062 = vmul.f32 %v1061, %v1060
        %v1063 = vmul.f32 0.5, %v1062
        %v1064 = vsub.f32 1.5, %v1063
        %v1065 = vmul.f32 %v1060, %v1064
        %vm1066 = vweird.f32 %v1056
        %vm1067 = vweird.f32 %v1060
        %vm1068 = vmor %vm1066, %vm1067
        %v1069 = vsel %vm1068, %v1060, %v1065
        %v1070 = vrsqrt.pop %v1057
        %v1071 = vmul.f32 %v1070, %v1057
        %v1072 = vmul.f32 %v1071, %v1070
        %v1073 = vmul.f32 0.5, %v1072
        %v1074 = vsub.f32 1.5, %v1073
        %v1075 = vmul.f32 %v1070, %v1074
        %vm1076 = vweird.f32 %v1057
        %vm1077 = vweird.f32 %v1070
        %vm1078 = vmor %vm1076, %vm1077
        %v1079 = vsel %vm1078, %v1070, %v1075
        %v1080 = vrsqrt.pop %v1058
        %v1081 = vmul.f32 %v1080, %v1058
        %v1082 = vmul.f32 %v1081, %v1080
        %v1083 = vmul.f32 0.5, %v1082
        %v1084 = vsub.f32 1.5, %v1083
        %v1085 = vmul.f32 %v1080, %v1084
        %vm1086 = vweird.f32 %v1058
        %vm1087 = vweird.f32 %v1080
        %vm1088 = vmor %vm1086, %vm1087
        %v1089 = vsel %vm1088, %v1080, %v1085
        %v1090 = vrsqrt.pop %v1059
        %v1091 = vmul.f32 %v1090, %v1059
        %v1092 = vmul.f32 %v1091, %v1090
        %v1093 = vmul.f32 0.5, %v1092
        %v1094 = vsub.f32 1.5, %v1093
        %v1095 = vmul.f32 %v1090, %v1094
        %vm1096 = vweird.f32 %v1059
        %vm1097 = vweird.f32 %v1090
        %vm1098 = vmor %vm1096, %vm1097
        %v1099 = vsel %vm1098, %v1090, %v1095
        %v1100 = vmul.f32 %v1052, %v1069
        %v1101 = vmul.f32 %v1053, %v1079
        %v1102 = vmul.f32 %v1054, %v1089
        %v1103 = vmul.f32 %v1055, %v1099
        %v1104 = vperm.slane %v529, 1
        %v1105 = vmul.f32 %v1100, %v1104
        %v1106 = vmul.f32 %v1101, %v1104
        %v1107 = vmul.f32 %v1102, %v1104
        %v1108 = vmul.f32 %v1103, %v1104
        %v1109 = vperm.slane %v529, 2
        %v1110 = vadd.f32 %v1105, %v1109
        %v1111 = vadd.f32 %v1106, %v1109
        %v1112 = vadd.f32 %v1107, %v1109
        %v1113 = vadd.f32 %v1108, %v1109
        %v1114 = vpack.c.bf16 %v1111, %v1110
        %v1115 = vpack.c.bf16 %v1113, %v1112
        %v1116 = vld [vmem:[%s440] sm:$0xf]
        %v1117 = vld [vmem:[%s440 + $0x4] sm:$0xf]
        %v1118 = vld [vmem:[%s440 + $0x8] sm:$0xf]
        %v1119 = vld [vmem:[%s440 + $0xc] sm:$0xf]
        %v1120 = vld [vmem:[%s440 + $0x10] sm:$0xf]
        %v1121 = vld [vmem:[%s440 + $0x14] sm:$0xf]
        %v1122 = vld [vmem:[%s440 + $0x18] sm:$0xf]
        %v1123 = vld [vmem:[%s440 + $0x1c] sm:$0xf]
        %v1124 = vld [vmem:[%s440 + $0x20] sm:$0xf]
        %v1125 = vld [vmem:[%s440 + $0x24] sm:$0xf]
        %v1126 = vld [vmem:[%s440 + $0x28] sm:$0xf]
        %v1127 = vld [vmem:[%s440 + $0x2c] sm:$0xf]
        %v1128 = vld [vmem:[%s440 + $0x30] sm:$0xf]
        %v1129 = vld [vmem:[%s440 + $0x34] sm:$0xf]
        %v1130 = vld [vmem:[%s440 + $0x38] sm:$0xf]
        %v1131 = vld [vmem:[%s440 + $0x3c] sm:$0xf]
        %v1132 = vld [vmem:[%s504] sm:$0x1]
        %v1134 = vperm.slane %v1132, 0
        %v1152 = vunpack.c.l.b16 %v1116
        %v1153 = vunpack.c.l.b16 %v1117
        %v1154 = vunpack.c.l.b16 %v1118
        %v1155 = vunpack.c.l.b16 %v1119
        %v1156 = vunpack.c.l.b16 %v1120
        %v1157 = vunpack.c.l.b16 %v1121
        %v1158 = vunpack.c.l.b16 %v1122
        %v1159 = vunpack.c.l.b16 %v1123
        %v1160 = vunpack.c.l.b16 %v1124
        %v1161 = vunpack.c.l.b16 %v1125
        %v1162 = vunpack.c.l.b16 %v1126
        %v1163 = vunpack.c.l.b16 %v1127
        %v1164 = vunpack.c.l.b16 %v1128
        %v1165 = vunpack.c.l.b16 %v1129
        %v1166 = vunpack.c.l.b16 %v1130
        %v1167 = vunpack.c.l.b16 %v1131
        %v1168 = vpack.c.b16 %v1153, %v1152
        %v1169 = vpack.c.b16 %v1155, %v1154
        %v1170 = vpack.c.b16 %v1157, %v1156
        %v1171 = vpack.c.b16 %v1159, %v1158
        %v1172 = vpack.c.b16 %v1161, %v1160
        %v1173 = vpack.c.b16 %v1163, %v1162
        %v1174 = vpack.c.b16 %v1165, %v1164
        %v1175 = vpack.c.b16 %v1167, %v1166
        %1184 = vmatpush.bf16.msra.mxu0 %v1175
        %1185 = vmatpush.bf16.msra.mxu0 %v1174
        %1186 = vmatpush.bf16.msra.mxu0 %v1173
        %1187 = vmatpush.bf16.msra.mxu0 %v1172
        %1188 = vmatpush.bf16.msra.mxu0 %v1171
        %1189 = vmatpush.bf16.msra.mxu0 %v1170
        %1190 = vmatpush.bf16.msra.mxu0 %v1169
        %1191 = vmatpush.bf16.msra.mxu0 %v1168
        %1192 = vmatmul.bf16.gmra.mxu0 %v1114
        %v1193 = vpop.f32.mrf.mxu0
        %v1194 = vadd.f32 %v1134, %v1193
        %v1195 = vpop.f32.mrf.mxu0
        %v1196 = vadd.f32 %v1134, %v1195
        %1197 = vmatmul.bf16.gmra.mxu0 %v1115
        %v1198 = vpop.f32.mrf.mxu0
        %v1199 = vadd.f32 %v1134, %v1198
        %v1200 = vpop.f32.mrf.mxu0
        %v1201 = vadd.f32 %v1134, %v1200
        %1202 = vdwg.mxu0
        %v1203 = vmax.f32 %v1194, 0.0
        %v1204 = vmax.f32 %v1196, 0.0
        %v1205 = vmax.f32 %v1199, 0.0
        %v1206 = vmax.f32 %v1201, 0.0
        %v1207 = vpack.c.bf16 %v1204, %v1203
        %v1208 = vpack.c.bf16 %v1206, %v1205
        %v1209 = vld [vmem:[%s450] sm:$0xf]
        %v1210 = vld [vmem:[%s450 + $0x4] sm:$0xf]
        %v1211 = vld [vmem:[%s450 + $0x8] sm:$0xf]
        %v1212 = vld [vmem:[%s450 + $0xc] sm:$0xf]
        %v1213 = vld [vmem:[%s450 + $0x10] sm:$0xf]
        %v1214 = vld [vmem:[%s450 + $0x14] sm:$0xf]
        %v1215 = vld [vmem:[%s450 + $0x18] sm:$0xf]
        %v1216 = vld [vmem:[%s450 + $0x1c] sm:$0xf]
        %v1217 = vld [vmem:[%s450 + $0x20] sm:$0xf]
        %v1218 = vld [vmem:[%s450 + $0x24] sm:$0xf]
        %v1219 = vld [vmem:[%s450 + $0x28] sm:$0xf]
        %v1220 = vld [vmem:[%s450 + $0x2c] sm:$0xf]
        %v1221 = vld [vmem:[%s450 + $0x30] sm:$0xf]
        %v1222 = vld [vmem:[%s450 + $0x34] sm:$0xf]
        %v1223 = vld [vmem:[%s450 + $0x38] sm:$0xf]
        %v1224 = vld [vmem:[%s450 + $0x3c] sm:$0xf]
        %v1225 = vperm.slane %v529, 0
        %v1242 = vunpack.c.l.b16 %v1209
        %v1243 = vunpack.c.l.b16 %v1210
        %v1244 = vunpack.c.l.b16 %v1211
        %v1245 = vunpack.c.l.b16 %v1212
        %v1246 = vunpack.c.l.b16 %v1213
        %v1247 = vunpack.c.l.b16 %v1214
        %v1248 = vunpack.c.l.b16 %v1215
        %v1249 = vunpack.c.l.b16 %v1216
        %v1250 = vunpack.c.l.b16 %v1217
        %v1251 = vunpack.c.l.b16 %v1218
        %v1252 = vunpack.c.l.b16 %v1219
        %v1253 = vunpack.c.l.b16 %v1220
        %v1254 = vunpack.c.l.b16 %v1221
        %v1255 = vunpack.c.l.b16 %v1222
        %v1256 = vunpack.c.l.b16 %v1223
        %v1257 = vunpack.c.l.b16 %v1224
        %v1258 = vpack.c.b16 %v1243, %v1242
        %v1259 = vpack.c.b16 %v1245, %v1244
        %v1260 = vpack.c.b16 %v1247, %v1246
        %v1261 = vpack.c.b16 %v1249, %v1248
        %v1262 = vpack.c.b16 %v1251, %v1250
        %v1263 = vpack.c.b16 %v1253, %v1252
        %v1264 = vpack.c.b16 %v1255, %v1254
        %v1265 = vpack.c.b16 %v1257, %v1256
        %1274 = vmatpush.bf16.msra.mxu0 %v1265
        %1275 = vmatpush.bf16.msra.mxu0 %v1264
        %1276 = vmatpush.bf16.msra.mxu0 %v1263
        %1277 = vmatpush.bf16.msra.mxu0 %v1262
        %1278 = vmatpush.bf16.msra.mxu0 %v1261
        %1279 = vmatpush.bf16.msra.mxu0 %v1260
        %1280 = vmatpush.bf16.msra.mxu0 %v1259
        %1281 = vmatpush.bf16.msra.mxu0 %v1258
        %1282 = vmatmul.bf16.gmra.mxu0 %v1207
        %v1283 = vpop.f32.mrf.mxu0
        %v1284 = vadd.f32 %v1225, %v1283
        %v1285 = vpop.f32.mrf.mxu0
        %v1286 = vadd.f32 %v1225, %v1285
        %1287 = vmatmul.bf16.gmra.mxu0 %v1208
        %v1288 = vpop.f32.mrf.mxu0
        %v1289 = vadd.f32 %v1225, %v1288
        %v1290 = vpop.f32.mrf.mxu0
        %v1291 = vadd.f32 %v1225, %v1290
        %1292 = vdwg.mxu0
        %v1293 = vadd.f32 %v1110, %v1284
        %v1294 = vadd.f32 %v1111, %v1286
        %v1295 = vadd.f32 %v1112, %v1289
        %v1296 = vadd.f32 %v1113, %v1291
        %1297 = vadd.xlane.f32.xlu0 %v1293
        %v1298 = vpop.xlane.xlu0 %1297
        %1299 = vadd.xlane.f32.xlu0 %v1294
        %v1300 = vpop.xlane.xlu0 %1299
        %1301 = vadd.xlane.f32.xlu0 %v1295
        %v1302 = vpop.xlane.xlu0 %1301
        %1303 = vadd.xlane.f32.xlu0 %v1296
        %v1304 = vpop.xlane.xlu0 %1303
        %v1305 = vmul.f32 %v1293, %v1293
        %v1306 = vmul.f32 %v1294, %v1294
        %v1307 = vmul.f32 %v1295, %v1295
        %v1308 = vmul.f32 %v1296, %v1296
        %1309 = vadd.xlane.f32.xlu0 %v1305
        %v1310 = vpop.xlane.xlu0 %1309
        %1311 = vadd.xlane.f32.xlu0 %v1306
        %v1312 = vpop.xlane.xlu0 %1311
        %1313 = vadd.xlane.f32.xlu0 %v1307
        %v1314 = vpop.xlane.xlu0 %1313
        %1315 = vadd.xlane.f32.xlu0 %v1308
        %v1316 = vpop.xlane.xlu0 %1315
        %v1317 = vmul.f32 %v1298, %v1035
        %v1318 = vmul.f32 %v1300, %v1035
        %v1319 = vmul.f32 %v1302, %v1035
        %v1320 = vmul.f32 %v1304, %v1035
        %v1321 = vmul.f32 %v1310, %v1035
        %v1322 = vmul.f32 %v1312, %v1035
        %v1323 = vmul.f32 %v1314, %v1035
        %v1324 = vmul.f32 %v1316, %v1035
        %v1325 = vmul.f32 %v1317, %v1317
        %v1326 = vmul.f32 %v1318, %v1318
        %v1327 = vmul.f32 %v1319, %v1319
        %v1328 = vmul.f32 %v1320, %v1320
        %v1329 = vsub.f32 %v1321, %v1325
        %v1330 = vsub.f32 %v1322, %v1326
        %v1331 = vsub.f32 %v1323, %v1327
        %v1332 = vsub.f32 %v1324, %v1328
        %v1333 = vsub.f32 %v1293, %v1317
        %v1334 = vsub.f32 %v1294, %v1318
        %v1335 = vsub.f32 %v1295, %v1319
        %v1336 = vsub.f32 %v1296, %v1320
        %v1337 = vadd.f32 %v1329, 1e-05
        %v1338 = vadd.f32 %v1330, 1e-05
        %v1339 = vadd.f32 %v1331, 1e-05
        %v1340 = vadd.f32 %v1332, 1e-05
        %v1341 = vrsqrt.pop %v1337
        %v1342 = vmul.f32 %v1341, %v1337
        %v1343 = vmul.f32 %v1342, %v1341
        %v1344 = vmul.f32 0.5, %v1343
        %v1345 = vsub.f32 1.5, %v1344
        %v1346 = vmul.f32 %v1341, %v1345
        %vm1347 = vweird.f32 %v1337
        %vm1348 = vweird.f32 %v1341
        %vm1349 = vmor %vm1347, %vm1348
        %v1350 = vsel %vm1349, %v1341, %v1346
        %v1351 = vrsqrt.pop %v1338
        %v1352 = vmul.f32 %v1351, %v1338
        %v1353 = vmul.f32 %v1352, %v1351
        %v1354 = vmul.f32 0.5, %v1353
        %v1355 = vsub.f32 1.5, %v1354
        %v1356 = vmul.f32 %v1351, %v1355
        %vm1357 = vweird.f32 %v1338
        %vm1358 = vweird.f32 %v1351
        %vm1359 = vmor %vm1357, %vm1358
        %v1360 = vsel %vm1359, %v1351, %v1356
        %v1361 = vrsqrt.pop %v1339
        %v1362 = vmul.f32 %v1361, %v1339
        %v1363 = vmul.f32 %v1362, %v1361
        %v1364 = vmul.f32 0.5, %v1363
        %v1365 = vsub.f32 1.5, %v1364
        %v1366 = vmul.f32 %v1361, %v1365
        %vm1367 = vweird.f32 %v1339
        %vm1368 = vweird.f32 %v1361
        %vm1369 = vmor %vm1367, %vm1368
        %v1370 = vsel %vm1369, %v1361, %v1366
        %v1371 = vrsqrt.pop %v1340
        %v1372 = vmul.f32 %v1371, %v1340
        %v1373 = vmul.f32 %v1372, %v1371
        %v1374 = vmul.f32 0.5, %v1373
        %v1375 = vsub.f32 1.5, %v1374
        %v1376 = vmul.f32 %v1371, %v1375
        %vm1377 = vweird.f32 %v1340
        %vm1378 = vweird.f32 %v1371
        %vm1379 = vmor %vm1377, %vm1378
        %v1380 = vsel %vm1379, %v1371, %v1376
        %v1381 = vmul.f32 %v1333, %v1350
        %v1382 = vmul.f32 %v1334, %v1360
        %v1383 = vmul.f32 %v1335, %v1370
        %v1384 = vmul.f32 %v1336, %v1380
        %v1385 = vperm.slane %v529, 3
        %v1386 = vmul.f32 %v1381, %v1385
        %v1387 = vmul.f32 %v1382, %v1385
        %v1388 = vmul.f32 %v1383, %v1385
        %v1389 = vmul.f32 %v1384, %v1385
        %v1390 = vperm.slane %v529, 4
        %v1391 = vadd.f32 %v1386, %v1390
        %v1392 = vadd.f32 %v1387, %v1390
        %v1393 = vadd.f32 %v1388, %v1390
        %v1394 = vadd.f32 %v1389, %v1390
        %1395 = vst [vmem:[#allocation2] sm:$0xff] %v1391
        %1396 = vst [vmem:[#allocation2 + $0x8] sm:$0xff] %v1392
        %1397 = vst [vmem:[#allocation2 + $0x10] sm:$0xff] %v1393
        %1398 = vst [vmem:[#allocation2 + $0x18] sm:$0xff] %v1394
        %p1399 = scmp.eq.s32.totalorder %s32, 1
        // Predicated region
        $region77: #{tpu_custom_call.1} parent=51 // pred_check
          %p1400 = pneg %p1399
        $region78: #{tpu_custom_call.1} parent=51 // pred_check_branch
          %1402 = sbr.rel (%p1400) target = $region80
        $region79: #{tpu_custom_call.1} parent=51 // pred_region
          %v1403 = vld [vmem:[%s7] sm:$0x3]
          %1404 = vadd.xlane.f32.xlu0 %v1391
          %v1405 = vpop.xlane.xlu0 %1404
          %1406 = vadd.xlane.f32.xlu0 %v1392
          %v1407 = vpop.xlane.xlu0 %1406
          %1408 = vadd.xlane.f32.xlu0 %v1393
          %v1409 = vpop.xlane.xlu0 %1408
          %1410 = vadd.xlane.f32.xlu0 %v1394
          %v1411 = vpop.xlane.xlu0 %1410
          %v1412 = vmul.f32 %v1391, %v1391
          %v1413 = vmul.f32 %v1392, %v1392
          %v1414 = vmul.f32 %v1393, %v1393
          %v1415 = vmul.f32 %v1394, %v1394
          %1416 = vadd.xlane.f32.xlu0 %v1412
          %v1417 = vpop.xlane.xlu0 %1416
          %1418 = vadd.xlane.f32.xlu0 %v1413
          %v1419 = vpop.xlane.xlu0 %1418
          %1420 = vadd.xlane.f32.xlu0 %v1414
          %v1421 = vpop.xlane.xlu0 %1420
          %1422 = vadd.xlane.f32.xlu0 %v1415
          %v1423 = vpop.xlane.xlu0 %1422
          %v1424 = vmul.f32 %v1405, %v1035
          %v1425 = vmul.f32 %v1407, %v1035
          %v1426 = vmul.f32 %v1409, %v1035
          %v1427 = vmul.f32 %v1411, %v1035
          %v1428 = vmul.f32 %v1417, %v1035
          %v1429 = vmul.f32 %v1419, %v1035
          %v1430 = vmul.f32 %v1421, %v1035
          %v1431 = vmul.f32 %v1423, %v1035
          %v1432 = vmul.f32 %v1424, %v1424
          %v1433 = vmul.f32 %v1425, %v1425
          %v1434 = vmul.f32 %v1426, %v1426
          %v1435 = vmul.f32 %v1427, %v1427
          %v1436 = vsub.f32 %v1428, %v1432
          %v1437 = vsub.f32 %v1429, %v1433
          %v1438 = vsub.f32 %v1430, %v1434
          %v1439 = vsub.f32 %v1431, %v1435
          %v1440 = vsub.f32 %v1391, %v1424
          %v1441 = vsub.f32 %v1392, %v1425
          %v1442 = vsub.f32 %v1393, %v1426
          %v1443 = vsub.f32 %v1394, %v1427
          %v1444 = vadd.f32 %v1436, 1e-05
          %v1445 = vadd.f32 %v1437, 1e-05
          %v1446 = vadd.f32 %v1438, 1e-05
          %v1447 = vadd.f32 %v1439, 1e-05
          %v1448 = vrsqrt.pop %v1444
          %v1449 = vmul.f32 %v1448, %v1444
          %v1450 = vmul.f32 %v1449, %v1448
          %v1451 = vmul.f32 0.5, %v1450
          %v1452 = vsub.f32 1.5, %v1451
          %v1453 = vmul.f32 %v1448, %v1452
          %vm1454 = vweird.f32 %v1444
          %vm1455 = vweird.f32 %v1448
          %vm1456 = vmor %vm1454, %vm1455
          %v1457 = vsel %vm1456, %v1448, %v1453
          %v1458 = vrsqrt.pop %v1445
          %v1459 = vmul.f32 %v1458, %v1445
          %v1460 = vmul.f32 %v1459, %v1458
          %v1461 = vmul.f32 0.5, %v1460
          %v1462 = vsub.f32 1.5, %v1461
          %v1463 = vmul.f32 %v1458, %v1462
          %vm1464 = vweird.f32 %v1445
          %vm1465 = vweird.f32 %v1458
          %vm1466 = vmor %vm1464, %vm1465
          %v1467 = vsel %vm1466, %v1458, %v1463
          %v1468 = vrsqrt.pop %v1446
          %v1469 = vmul.f32 %v1468, %v1446
          %v1470 = vmul.f32 %v1469, %v1468
          %v1471 = vmul.f32 0.5, %v1470
          %v1472 = vsub.f32 1.5, %v1471
          %v1473 = vmul.f32 %v1468, %v1472
          %vm1474 = vweird.f32 %v1446
          %vm1475 = vweird.f32 %v1468
          %vm1476 = vmor %vm1474, %vm1475
          %v1477 = vsel %vm1476, %v1468, %v1473
          %v1478 = vrsqrt.pop %v1447
          %v1479 = vmul.f32 %v1478, %v1447
          %v1480 = vmul.f32 %v1479, %v1478
          %v1481 = vmul.f32 0.5, %v1480
          %v1482 = vsub.f32 1.5, %v1481
          %v1483 = vmul.f32 %v1478, %v1482
          %vm1484 = vweird.f32 %v1447
          %vm1485 = vweird.f32 %v1478
          %vm1486 = vmor %vm1484, %vm1485
          %v1487 = vsel %vm1486, %v1478, %v1483
          %v1488 = vmul.f32 %v1440, %v1457
          %v1489 = vmul.f32 %v1441, %v1467
          %v1490 = vmul.f32 %v1442, %v1477
          %v1491 = vmul.f32 %v1443, %v1487
          %v1492 = vperm.slane %v1403, 0
          %v1493 = vmul.f32 %v1488, %v1492
          %v1494 = vmul.f32 %v1489, %v1492
          %v1495 = vmul.f32 %v1490, %v1492
          %v1496 = vmul.f32 %v1491, %v1492
          %v1497 = vperm.slane %v1403, 1
          %v1498 = vadd.f32 %v1493, %v1497
          %v1499 = vadd.f32 %v1494, %v1497
          %v1500 = vadd.f32 %v1495, %v1497
          %v1501 = vadd.f32 %v1496, %v1497
          %1502 = vst [vmem:[#allocation12] sm:$0xff] %v1498
          %1503 = vst [vmem:[#allocation12 + $0x8] sm:$0xff] %v1499
          %1504 = vst [vmem:[#allocation12 + $0x10] sm:$0xff] %v1500
          %1505 = vst [vmem:[#allocation12 + $0x18] sm:$0xff] %v1501
        $region80: #{tpu_custom_call.1} parent=51 // pred_fallthru
          _
        // Predicated region
        $region81: #{tpu_custom_call.1} parent=51 // pred_check
          %p1506 = pneg %p260
        $region82: #{tpu_custom_call.1} parent=51 // pred_check_branch
          %1508 = sbr.rel (%p1506) target = $region84
        $region83: #{tpu_custom_call.1} parent=51 // pred_region
          %s1509 = smul.u32 2, %s31
          %1511 = vsyncadd [#allocation5], 0
          %s1512 = smul.addr %s1509, 2
          %s1513 = smul.addr %s1512, 8
          %s1514 = scalar_lea.hbm %s8, %s1513
          %s1515 = sshll.u32 [#allocation12], 4
          %s1516 = int_to_ptr.vmem [resolvable:$true] %s1515
          %s1517 = sshll.u32 %s1514, 4
          %s1518 = int_to_ptr.hbm [resolvable:$true] %s1517
          %1523 = dma.vmem_to_hbm [thread:$0]  %s1516, 512, %s1518, [#allocation5], 128, 128, 8
        $region84: #{tpu_custom_call.1} parent=51 // pred_fallthru
          _
        // Predicated region
        $region85: #{tpu_custom_call.1} parent=51 // pred_check
          %p1524 = pneg %p260
        $region86: #{tpu_custom_call.1} parent=51 // pred_check_branch
          %1526 = sbr.rel (%p1524) target = $region88
        $region87: #{tpu_custom_call.1} parent=51 // pred_region
          %1528 = dma.done [#allocation5], 512
        $region88: #{tpu_custom_call.1} parent=51 // pred_fallthru
          _
      $region52: #{tpu_custom_call.1} parent=5 // pred_fallthru
        _
      %p1529 = scmp.le.s32.totalorder 2, %s22
      // Predicated region
      $region89: #{tpu_custom_call.1} parent=5 // pred_check
        %p1530 = pneg %p1529
      $region90: #{tpu_custom_call.1} parent=5 // pred_check_branch
        %1532 = sbr.rel (%p1530) target = $region92
      $region91: #{tpu_custom_call.1} parent=5 // pred_region
        %s1533 = ssub.s32 %s22, 2
      $region92: #{tpu_custom_call.1} parent=5 // pred_fallthru
        _
    $region6: #{tpu_custom_call.1} parent=1 // loop_footer
      %s26 = sadd.s32 1, %s22
    $region7: #{tpu_custom_call.1} parent=1 // loop_footer_branch
      %21 = sbr.rel target = $region3
    $region8: #{tpu_custom_call.1} parent=1 // loop_exit
      _
    %1534 = vsyncpa [#allocation4], 1
    %s1535 = scalar_lea.sflag [#allocation4], 1
    %1536 = vsyncpa %s1535, 1
    %1537 = vsyncpa [#allocation7], 1
    %s1538 = scalar_lea.sflag [#allocation7], 1
    %1539 = vsyncpa %s1538, 1
    %1540 = vsyncpa [#allocation10], 1
    %s1541 = scalar_lea.sflag [#allocation10], 1
    %1542 = vsyncpa %s1541, 1
    %1543 = vsyncpa [#allocation5], 1
    %s1544 = scalar_lea.sflag [#allocation5], 1
    %1545 = vsyncpa %s1544, 1

</llo_original>
